<compile_context>
chip_gen: v7x
topology: tpu7x:2x2x1
jax: 0.10.0
libtpu: 0.0.40
codegen_flags: <defaults>
</compile_context>

<pallas_src>
import functools

import jax
import jax.numpy as jnp
import numpy as np
from jax import lax
from jax.experimental import pallas as pl
from jax.experimental.pallas import tpu as pltpu


def _layernorm(x, gamma, beta, eps=1e-6):
    mu = jnp.mean(x, axis=-1, keepdims=True)
    var = jnp.mean(jnp.square(x - mu), axis=-1, keepdims=True)
    return (x - mu) * lax.rsqrt(var + eps) * gamma + beta


# ---------------------------------------------------------------------------
# Pass 1: K / V projection (LayerNorm1 -> Wk / Wv), tiled over (batch, seq).
# Writes the f32 `past` tensors; the bf16 head-split copies consumed by the
# attention kernel are produced by a cheap wrapper-side reshape/transpose.
# ---------------------------------------------------------------------------
def kv_proj_kernel(x_ref, ln1_g_ref, ln1_b_ref, wk_ref, bk_ref, wv_ref, bv_ref,
                   k_out_ref, v_out_ref):
    bf16 = jnp.bfloat16
    xf = x_ref[0]                                                    # [TS, D] f32
    nf = _layernorm(xf, ln1_g_ref[...], ln1_b_ref[...]).astype(bf16)
    k_out_ref[0] = jnp.dot(nf, wk_ref[...],
                           preferred_element_type=jnp.float32) + bk_ref[...]
    v_out_ref[0] = jnp.dot(nf, wv_ref[...],
                           preferred_element_type=jnp.float32) + bv_ref[...]


# ---------------------------------------------------------------------------
# Pass 2: per-(batch, query-tile) attention with flash-style streaming over KV
# blocks, then output projection + residual + LayerNorm2 + FFN + residual.
# ---------------------------------------------------------------------------
def attn_ffn_kernel(num_heads,
                    x_ref, maskb_ref, k3_ref, v3_ref,
                    ln1_g_ref, ln1_b_ref, wq_ref, bq_ref, wo_ref, bo_ref,
                    ln2_g_ref, ln2_b_ref, w1_ref, b1_ref, w2_ref, b2_ref,
                    out_ref,
                    q3_scr, acc_scr, m_scr, l_scr):
    bf16 = jnp.bfloat16
    H = num_heads
    TQ, D = x_ref.shape[1], x_ref.shape[2]
    depth = D // H
    scale = 1.0 / float(np.sqrt(depth))
    kv = pl.program_id(2)
    nkv = pl.num_programs(2)

    # First KV block of this (batch, query tile): project Q, reset online-softmax
    # state.  This work (and the finalize below) is amortized over all KV steps.
    @pl.when(kv == 0)
    def _():
        x_q = x_ref[0]                                               # [TQ, D] f32
        n_q = _layernorm(x_q, ln1_g_ref[...], ln1_b_ref[...])
        q = jnp.dot(n_q.astype(bf16), wq_ref[...],
                    preferred_element_type=jnp.float32) + bq_ref[...]
        # TODO(synk): replace this once-per-tile per-head slice loop (and the concat
        # in the finalize) with a single reshape+transpose / pltpu.einshape once
        # (1,0,2) transposes are verified to lower on all target Mosaic versions.
        for h in range(H):
            q3_scr[h] = q[:, h * depth:(h + 1) * depth].astype(bf16)
        m_scr[...] = jnp.full(m_scr.shape, -1e30, jnp.float32)
        l_scr[...] = jnp.zeros(l_scr.shape, jnp.float32)
        acc_scr[...] = jnp.zeros(acc_scr.shape, jnp.float32)

    # --- online-softmax update for this KV block (head-batched dot_generals) ---
    q3 = q3_scr[...]                                                 # [H, TQ, depth] bf16
    k3 = k3_ref[0]                                                   # [H, TK, depth] bf16
    v3 = v3_ref[0]                                                   # [H, TK, depth] bf16
    s = lax.dot_general(q3, k3, (((2,), (2,)), ((0,), (0,))),
                        preferred_element_type=jnp.float32) * scale  # [H, TQ, TK]
    s = s + maskb_ref[...].astype(jnp.float32)[None, :, :]

    m_prev = m_scr[...]                                              # [H, TQ]
    m_new = jnp.maximum(m_prev, jnp.max(s, axis=-1))
    alpha = jnp.exp(m_prev - m_new)
    p = jnp.exp(s - m_new[:, :, None])
    l_scr[...] = alpha * l_scr[...] + jnp.sum(p, axis=-1)
    acc_scr[...] = alpha[:, :, None] * acc_scr[...] + lax.dot_general(
        p.astype(bf16), v3, (((2,), (1,)), ((0,), (0,))),
        preferred_element_type=jnp.float32)                          # [H, TQ, depth]
    m_scr[...] = m_new

    # --- last KV block: normalize, output projection, residual, LN2, FFN ---
    @pl.when(kv == nkv - 1)
    def _():
        ctx = acc_scr[...] * pl.reciprocal(l_scr[...], approx=True)[:, :, None]
        attn_cat = jnp.concatenate([ctx[h] for h in range(H)], axis=-1)  # [TQ, D]
        attn_out = jnp.dot(attn_cat.astype(bf16), wo_ref[...],
                           preferred_element_type=jnp.float32) + bo_ref[...]
        out1 = x_ref[0] + attn_out                 # dropout1 = identity (eval)
        l2 = _layernorm(out1, ln2_g_ref[...], ln2_b_ref[...])
        h1 = jnp.maximum(
            jnp.dot(l2.astype(bf16), w1_ref[...],
                    preferred_element_type=jnp.float32) + b1_ref[...], 0.0)
        ffn = jnp.dot(h1.astype(bf16), w2_ref[...],
                      preferred_element_type=jnp.float32) + b2_ref[...]
        out_ref[0] = out1 + ffn                    # dropout2 = identity (eval)


# ---------------------------------------------------------------------------
# Tiling / VMEM heuristics
# ---------------------------------------------------------------------------
def _pick_divisor(n, prefs):
    for t in prefs:
        if t <= n and n % t == 0:
            return t
    return n


def _choose_seq_tile(S):
    return S if S <= 512 else _pick_divisor(S, (512, 256, 128))


def _choose_attn_tiles(S, H, logits_budget_bytes=8 << 20):
    tq = S if S <= 128 else _pick_divisor(S, (512, 256, 128))
    tk = S if S <= 128 else _pick_divisor(S, (512, 256, 128))

    def fp(a, b):  # f32 logits + exp(p) temporaries
        return 2 * 4 * H * a * b

    # Shrink TK first so TQ stays >= 256 (M dim of the FLOP-dominant matmuls on
    # the 256x256 MXU generations); only then shrink TQ.
    while fp(tq, tk) > logits_budget_bytes and tk > 128 and S % (tk // 2) == 0:
        tk //= 2
    while fp(tq, tk) > logits_budget_bytes and tq > 128 and S % (tq // 2) == 0:
        tq //= 2
    return tq, tk


def _vmem_limit_bytes(resident_bytes):
    # Clamp to physical VMEM (64 MiB per TC on v7x, 128 MiB on v5e/v6e) minus
    # ~8 MiB DMA headroom; never below the 32 MiB default scoped limit.
    try:
        phys = int(pltpu.get_tpu_info().vmem_capacity_bytes)
    except Exception:
        phys = 64 << 20                   # conservative (v7x) if query fails
    want = int(1.4 * resident_bytes) + (4 << 20)
    return int(min(max(want, 32 << 20), phys - (8 << 20)))


# ---------------------------------------------------------------------------
# Wrapper
# ---------------------------------------------------------------------------
def _encoder_layer_impl(x, mask, params, num_heads, single_buffer_weights):
    B, S, D = x.shape
    assert D % num_heads == 0
    depth = D // num_heads
    dff = params["w1"].shape[1]
    bf16 = jnp.bfloat16
    f32 = jnp.float32

    # bf16 weights: halves resident VMEM / DMA and doubles MXU rate; f32 accumulate.
    wq, wk, wv, wo = (params[n].astype(bf16) for n in ("wq", "wk", "wv", "wo"))
    w1, w2 = params["w1"].astype(bf16), params["w2"].astype(bf16)

    if mask is None:
        mask = jnp.zeros((S, S), f32)
    # Additive mask bias in bf16 (halves the per-step mask DMA).
    # TODO(synk): for a purely causal mask this could be generated in-kernel from
    # broadcasted_iota and the (qi, kv) grid indices, removing the DMA entirely.
    mask_bias = (jnp.reshape(mask, (S, S)).astype(f32) * f32(-1e9)).astype(bf16)

    def _make_shared(grid_rank):
        def shared(shape):
            zero = (0,) * len(shape)
            if grid_rank == 2:
                def imap(b, si):
                    return zero
            else:
                def imap(b, qi, kv):
                    return zero
            if single_buffer_weights:
                # Grid-invariant operand: a second buffer is never used for prefetch.
                return pl.BlockSpec(shape, imap, pipeline_mode=pl.Buffered(1))
            return pl.BlockSpec(shape, imap)
        return shared

    wmult = 1 if single_buffer_weights else 2

    # ---------------- pass 1: K / V projection ----------------
    TS = _choose_seq_tile(S)
    ns = S // TS
    res1 = (wmult * 2 * (2 * D * D) + wmult * 4 * (4 * D)   # Wk/Wv bf16 + small f32
            + 2 * TS * D * 4                                 # x tile (double-buffered)
            + 2 * 2 * TS * D * 4                             # k/v output tiles
            + 4 * TS * D * 4)                                # in-kernel temporaries
    shared2 = _make_shared(2)
    kv_proj = pl.pallas_call(
        kv_proj_kernel,
        out_shape=[jax.ShapeDtypeStruct((B, S, D), f32)] * 2,
        grid_spec=pltpu.PrefetchScalarGridSpec(
            num_scalar_prefetch=0,
            grid=(B, ns),
            in_specs=[
                pl.BlockSpec((1, TS, D), lambda b, si: (b, si, 0)),
                shared2((1, D)), shared2((1, D)),            # ln1 gamma / beta
                shared2((D, D)), shared2((1, D)),            # Wk, bk
                shared2((D, D)), shared2((1, D)),            # Wv, bv
            ],
            out_specs=[pl.BlockSpec((1, TS, D), lambda b, si: (b, si, 0))] * 2,
        ),
        compiler_params=pltpu.CompilerParams(
            dimension_semantics=("parallel", "parallel"),
            vmem_limit_bytes=_vmem_limit_bytes(res1),
        ),
    )
    k_past, v_past = kv_proj(x, params["ln1_g"], params["ln1_b"],
                             wk, params["bk"], wv, params["bv"])

    # Head-split bf16 K/V for the attention pass (wrapper-side layout plumbing;
    # keeps the kernels free of per-step per-head relayout work).
    k_heads = jnp.transpose(
        k_past.astype(bf16).reshape(B, S, num_heads, depth), (0, 2, 1, 3))
    v_heads = jnp.transpose(
        v_past.astype(bf16).reshape(B, S, num_heads, depth), (0, 2, 1, 3))

    # ---------------- pass 2: flash-style attention + FFN ----------------
    TQ, TK = _choose_attn_tiles(S, num_heads)
    nq, nkv = S // TQ, S // TK
    res2 = (wmult * 2 * (2 * D * D + 2 * D * dff)            # bf16 weights
            + wmult * 4 * (7 * D + dff)                      # biases / LN params
            + 2 * TQ * D * 4 + 2 * TQ * TK * 2               # x tile, mask tile
            + 2 * 2 * TK * D * 2                             # K/V blocks (bf16)
            + 2 * TQ * D * 4                                 # output tile
            + num_heads * TQ * depth * 6 + num_heads * TQ * 8  # scratch
            + 2 * num_heads * TQ * TK * 4                    # logits / p temporaries
            + TQ * dff * 4 + 4 * TQ * D * 4)                 # FFN hidden + misc
    shared3 = _make_shared(3)
    attn_ffn = pl.pallas_call(
        functools.partial(attn_ffn_kernel, num_heads),
        out_shape=jax.ShapeDtypeStruct((B, S, D), f32),
        grid_spec=pltpu.PrefetchScalarGridSpec(
            num_scalar_prefetch=0,
            grid=(B, nq, nkv),
            in_specs=[
                pl.BlockSpec((1, TQ, D), lambda b, qi, kv: (b, qi, 0)),
                pl.BlockSpec((TQ, TK), lambda b, qi, kv: (qi, kv)),
                pl.BlockSpec((1, num_heads, TK, depth), lambda b, qi, kv: (b, 0, kv, 0)),
                pl.BlockSpec((1, num_heads, TK, depth), lambda b, qi, kv: (b, 0, kv, 0)),
                shared3((1, D)), shared3((1, D)),            # ln1 gamma / beta
                shared3((D, D)), shared3((1, D)),            # Wq, bq
                shared3((D, D)), shared3((1, D)),            # Wo, bo
                shared3((1, D)), shared3((1, D)),            # ln2 gamma / beta
                shared3((D, dff)), shared3((1, dff)),        # FFN W1, b1
                shared3((dff, D)), shared3((1, D)),          # FFN W2, b2
            ],
            out_specs=pl.BlockSpec((1, TQ, D), lambda b, qi, kv: (b, qi, 0)),
            scratch_shapes=[
                pltpu.VMEM((num_heads, TQ, depth), bf16),        # q, head-split
                pltpu.VMEM((num_heads, TQ, depth), jnp.float32),  # attention acc
                pltpu.VMEM((num_heads, TQ), jnp.float32),        # running max
                pltpu.VMEM((num_heads, TQ), jnp.float32),        # running denom
            ],
        ),
        compiler_params=pltpu.CompilerParams(
            # batch and query-tile axes are independent -> shard across TensorCores
            # (keeps the 2nd v7x core busy even at B == 1); kv is the online-softmax
            # reduction axis -> sequential.
            dimension_semantics=("parallel", "parallel", "arbitrary"),
            vmem_limit_bytes=_vmem_limit_bytes(res2),
        ),
    )
    out = attn_ffn(
        x, mask_bias, k_heads, v_heads,
        params["ln1_g"], params["ln1_b"],
        wq, params["bq"], wo, params["bo"],
        params["ln2_g"], params["ln2_b"],
        w1, params["b1"], w2, params["b2"],
    )
    jax.block_until_ready((out, k_past, v_past))
    return out, (k_past, v_past)


def encoder_layer(x, mask, params, num_heads):
    # TODO(synk): the incremental-decoding path (past != None: concat cached K/V
    # and widen the mask) is not implemented.
    try:
        return _encoder_layer_impl(x, mask, params, num_heads, True)
    except Exception:
        # Fallback in case pl.Buffered(1) single-buffering is unsupported by this
        # JAX/Mosaic build; semantics are identical, weights just double-buffer.
        return _encoder_layer_impl(x, mask, params, num_heads, False)


# ---------------------------------------------------------------------------
# Pure-JAX f32 reference (mirrors the PyTorch forward) + test harness
# ---------------------------------------------------------------------------
def reference(x, mask, params, num_heads):
    def ln(t, g, b):
        mu = jnp.mean(t, axis=-1, keepdims=True)
        var = jnp.mean((t - mu) ** 2, axis=-1, keepdims=True)
        return (t - mu) / jnp.sqrt(var + 1e-6) * g + b

    B, S, D = x.shape
    depth = D // num_heads
    normed = ln(x, params["ln1_g"][0], params["ln1_b"][0])
    q = normed @ params["wq"] + params["bq"][0]
    k = normed @ params["wk"] + params["bk"][0]
    v = normed @ params["wv"] + params["bv"][0]

    def split(t):
        return t.reshape(B, S, num_heads, depth).transpose(0, 2, 1, 3)

    qh, kh, vh = split(q), split(k), split(v)
    logits = jnp.einsum("bhqd,bhkd->bhqk", qh, kh) / np.sqrt(depth) + mask * (-1e9)
    attn = jax.nn.softmax(logits, axis=-1)
    o = jnp.einsum("bhqk,bhkd->bhqd", attn, vh).transpose(0, 2, 1, 3).reshape(B, S, D)
    attn_out = o @ params["wo"] + params["bo"][0]
    out1 = x + attn_out
    l2 = ln(out1, params["ln2_g"][0], params["ln2_b"][0])
    ffn = jnp.maximum(l2 @ params["w1"] + params["b1"][0], 0.0) @ params["w2"] + params["b2"][0]
    return out1 + ffn, k, v


def init_params(key, d_model, dff):
    keys = jax.random.split(key, 12)
    n = lambda k, s: (0.02 * jax.random.normal(k, s)).astype(jnp.float32)
    return {
        "ln1_g": jnp.ones((1, d_model), jnp.float32),
        "ln1_b": jnp.zeros((1, d_model), jnp.float32),
        "wq": n(keys[0], (d_model, d_model)), "bq": n(keys[1], (1, d_model)),
        "wk": n(keys[2], (d_model, d_model)), "bk": n(keys[3], (1, d_model)),
        "wv": n(keys[4], (d_model, d_model)), "bv": n(keys[5], (1, d_model)),
        "wo": n(keys[6], (d_model, d_model)), "bo": n(keys[7], (1, d_model)),
        "ln2_g": jnp.ones((1, d_model), jnp.float32),
        "ln2_b": jnp.zeros((1, d_model), jnp.float32),
        "w1": n(keys[8], (d_model, dff)), "b1": n(keys[9], (1, dff)),
        "w2": n(keys[10], (dff, d_model)), "b2": n(keys[11], (1, d_model)),
    }


if __name__ == "__main__":
    B, S, D, H, DFF = 2, 8, 32, 4, 64

    key = jax.random.PRNGKey(0)
    kx, kp = jax.random.split(key)
    x = jax.random.normal(kx, (B, S, D), jnp.float32)
    # causal mask: 1.0 where attention is disallowed (future positions)
    mask = jnp.triu(jnp.ones((S, S), jnp.float32), k=1)
    params = init_params(kp, D, DFF)

    out, (k_past, v_past) = encoder_layer(x, mask, params, H)
    jax.block_until_ready((out, k_past, v_past))

    ref_out, ref_k, ref_v = reference(x, mask, params, H)
    # Tolerances loosened vs. pure-f32: MXU operands are bf16 (f32 accumulation) and
    # the softmax uses the approximate EUP reciprocal.
    np.testing.assert_allclose(np.asarray(out), np.asarray(ref_out), rtol=1e-2, atol=1e-2)
    np.testing.assert_allclose(np.asarray(k_past), np.asarray(ref_k), rtol=1e-2, atol=1e-2)
    np.testing.assert_allclose(np.asarray(v_past), np.asarray(ref_v), rtol=1e-2, atol=1e-2)

    print("KERNEL_OK")
</pallas_src>

<mosaic_0001>
module attributes {stable_mosaic.version = 11 : i64} {
  func.func @kv_proj_kernel(%arg0: i32, %arg1: i32, %arg2: memref<1x8x32xf32, #tpu.memory_space<vmem>>, %arg3: memref<1x32xf32, #tpu.memory_space<vmem>>, %arg4: memref<1x32xf32, #tpu.memory_space<vmem>>, %arg5: memref<32x32xbf16, #tpu.memory_space<vmem>>, %arg6: memref<1x32xf32, #tpu.memory_space<vmem>>, %arg7: memref<32x32xbf16, #tpu.memory_space<vmem>>, %arg8: memref<1x32xf32, #tpu.memory_space<vmem>>, %arg9: memref<1x8x32xf32, #tpu.memory_space<vmem>>, %arg10: memref<1x8x32xf32, #tpu.memory_space<vmem>>) attributes {dimension_semantics = [#tpu.dimension_semantics<parallel>, #tpu.dimension_semantics<parallel>], iteration_bounds = array<i64: 2, 1>, scalar_prefetch = 0 : i64, scratch_operands = 0 : i64, tpu.core_type = #tpu.core_type<tc>, window_params = [{transform_indices = @transform_0, window_bounds = array<i64: 1, 8, 32>}, {pipeline_mode = #tpu.pipeline_mode<synchronous>, transform_indices = @transform_1, window_bounds = array<i64: 1, 32>}, {pipeline_mode = #tpu.pipeline_mode<synchronous>, transform_indices = @transform_2, window_bounds = array<i64: 1, 32>}, {pipeline_mode = #tpu.pipeline_mode<synchronous>, transform_indices = @transform_3, window_bounds = array<i64: 32, 32>}, {pipeline_mode = #tpu.pipeline_mode<synchronous>, transform_indices = @transform_4, window_bounds = array<i64: 1, 32>}, {pipeline_mode = #tpu.pipeline_mode<synchronous>, transform_indices = @transform_5, window_bounds = array<i64: 32, 32>}, {pipeline_mode = #tpu.pipeline_mode<synchronous>, transform_indices = @transform_6, window_bounds = array<i64: 1, 32>}, {transform_indices = @transform_7, window_bounds = array<i64: 1, 8, 32>}, {transform_indices = @transform_8, window_bounds = array<i64: 1, 8, 32>}]} {
    %c0 = arith.constant 0 : index
    %c0_0 = arith.constant 0 : index
    %c0_1 = arith.constant 0 : index
    %0 = vector.load %arg2[%c0, %c0_0, %c0_1] : memref<1x8x32xf32, #tpu.memory_space<vmem>>, vector<1x8x32xf32>
    %1 = vector.shape_cast %0 : vector<1x8x32xf32> to vector<8x32xf32>
    %c0_2 = arith.constant 0 : index
    %c0_3 = arith.constant 0 : index
    %2 = vector.load %arg3[%c0_2, %c0_3] : memref<1x32xf32, #tpu.memory_space<vmem>>, vector<1x32xf32>
    %c0_4 = arith.constant 0 : index
    %c0_5 = arith.constant 0 : index
    %3 = vector.load %arg4[%c0_4, %c0_5] : memref<1x32xf32, #tpu.memory_space<vmem>>, vector<1x32xf32>
    %cst = arith.constant dense<0.000000e+00> : vector<8xf32>
    %4 = vector.multi_reduction <add>, %1, %cst [1] : vector<8x32xf32> to vector<8xf32>
    %5 = vector.shape_cast %4 : vector<8xf32> to vector<8x1xf32>
    %cst_6 = arith.constant 3.200000e+01 : f32
    %6 = vector.broadcast %cst_6 : f32 to vector<8x1xf32>
    %7 = arith.divf %5, %6 : vector<8x1xf32>
    %8 = vector.broadcast %7 : vector<8x1xf32> to vector<8x32xf32>
    %9 = arith.subf %1, %8 : vector<8x32xf32>
    %10 = arith.mulf %9, %9 : vector<8x32xf32>
    %cst_7 = arith.constant dense<0.000000e+00> : vector<8xf32>
    %11 = vector.multi_reduction <add>, %10, %cst_7 [1] : vector<8x32xf32> to vector<8xf32>
    %12 = vector.shape_cast %11 : vector<8xf32> to vector<8x1xf32>
    %cst_8 = arith.constant 3.200000e+01 : f32
    %13 = vector.broadcast %cst_8 : f32 to vector<8x1xf32>
    %14 = arith.divf %12, %13 : vector<8x1xf32>
    %15 = vector.broadcast %7 : vector<8x1xf32> to vector<8x32xf32>
    %16 = arith.subf %1, %15 : vector<8x32xf32>
    %cst_9 = arith.constant 9.99999997E-7 : f32
    %17 = vector.broadcast %cst_9 : f32 to vector<8x1xf32>
    %18 = arith.addf %14, %17 : vector<8x1xf32>
    %19 = math.rsqrt %18 : vector<8x1xf32>
    %20 = vector.broadcast %19 : vector<8x1xf32> to vector<8x32xf32>
    %21 = arith.mulf %16, %20 : vector<8x32xf32>
    %22 = vector.broadcast %2 : vector<1x32xf32> to vector<8x32xf32>
    %23 = arith.mulf %21, %22 : vector<8x32xf32>
    %24 = vector.broadcast %3 : vector<1x32xf32> to vector<8x32xf32>
    %25 = arith.addf %23, %24 : vector<8x32xf32>
    %26 = arith.truncf %25 : vector<8x32xf32> to vector<8x32xbf16>
    %c0_10 = arith.constant 0 : index
    %c0_11 = arith.constant 0 : index
    %27 = vector.load %arg5[%c0_10, %c0_11] : memref<32x32xbf16, #tpu.memory_space<vmem>>, vector<32x32xbf16>
    %cst_12 = arith.constant dense<0.000000e+00> : vector<8x32xf32>
    %28 = tpu.matmul %26, %27, %cst_12 {dimension_numbers = #tpu.dot_dimension_numbers<[1], [0], [0], [1], [0, 0, 1, 1], [], []>} : vector<8x32xbf16>, vector<32x32xbf16>, vector<8x32xf32> -> vector<8x32xf32>
    %c0_13 = arith.constant 0 : index
    %c0_14 = arith.constant 0 : index
    %29 = vector.load %arg6[%c0_13, %c0_14] : memref<1x32xf32, #tpu.memory_space<vmem>>, vector<1x32xf32>
    %30 = vector.broadcast %29 : vector<1x32xf32> to vector<8x32xf32>
    %31 = arith.addf %28, %30 : vector<8x32xf32>
    %c0_15 = arith.constant 0 : index
    %c0_16 = arith.constant 0 : index
    %c0_17 = arith.constant 0 : index
    %32 = vector.load %arg9[%c0_15, %c0_16, %c0_17] : memref<1x8x32xf32, #tpu.memory_space<vmem>>, vector<1x8x32xf32>
    %33 = vector.shape_cast %32 : vector<1x8x32xf32> to vector<8x32xf32>
    %34 = vector.shape_cast %31 : vector<8x32xf32> to vector<1x8x32xf32>
    tpu.vector_store %arg9[%c0_15, %c0_16, %c0_17], %34 {strides = array<i32>} : memref<1x8x32xf32, #tpu.memory_space<vmem>>, vector<1x8x32xf32>,
    %c0_18 = arith.constant 0 : index
    %c0_19 = arith.constant 0 : index
    %35 = vector.load %arg7[%c0_18, %c0_19] : memref<32x32xbf16, #tpu.memory_space<vmem>>, vector<32x32xbf16>
    %cst_20 = arith.constant dense<0.000000e+00> : vector<8x32xf32>
    %36 = tpu.matmul %26, %35, %cst_20 {dimension_numbers = #tpu.dot_dimension_numbers<[1], [0], [0], [1], [0, 0, 1, 1], [], []>} : vector<8x32xbf16>, vector<32x32xbf16>, vector<8x32xf32> -> vector<8x32xf32>
    %c0_21 = arith.constant 0 : index
    %c0_22 = arith.constant 0 : index
    %37 = vector.load %arg8[%c0_21, %c0_22] : memref<1x32xf32, #tpu.memory_space<vmem>>, vector<1x32xf32>
    %38 = vector.broadcast %37 : vector<1x32xf32> to vector<8x32xf32>
    %39 = arith.addf %36, %38 : vector<8x32xf32>
    %c0_23 = arith.constant 0 : index
    %c0_24 = arith.constant 0 : index
    %c0_25 = arith.constant 0 : index
    %40 = vector.load %arg10[%c0_23, %c0_24, %c0_25] : memref<1x8x32xf32, #tpu.memory_space<vmem>>, vector<1x8x32xf32>
    %41 = vector.shape_cast %40 : vector<1x8x32xf32> to vector<8x32xf32>
    %42 = vector.shape_cast %39 : vector<8x32xf32> to vector<1x8x32xf32>
    tpu.vector_store %arg10[%c0_23, %c0_24, %c0_25], %42 {strides = array<i32>} : memref<1x8x32xf32, #tpu.memory_space<vmem>>, vector<1x8x32xf32>,
    return
  }
  func.func @transform_0(%arg0: i32, %arg1: i32) -> (i32, i32, i32) {
    %c0_i32 = arith.constant 0 : i32
    %c0_i32_0 = arith.constant 0 : i32
    return %arg0, %arg1, %c0_i32 : i32, i32, i32
  }
  func.func @transform_1(%arg0: i32, %arg1: i32) -> (i32, i32) {
    %c0_i32 = arith.constant 0 : i32
    %c0_i32_0 = arith.constant 0 : i32
    %c0_i32_1 = arith.constant 0 : i32
    return %c0_i32, %c0_i32_0 : i32, i32
  }
  func.func @transform_2(%arg0: i32, %arg1: i32) -> (i32, i32) {
    %c0_i32 = arith.constant 0 : i32
    %c0_i32_0 = arith.constant 0 : i32
    %c0_i32_1 = arith.constant 0 : i32
    return %c0_i32, %c0_i32_0 : i32, i32
  }
  func.func @transform_3(%arg0: i32, %arg1: i32) -> (i32, i32) {
    %c0_i32 = arith.constant 0 : i32
    %c0_i32_0 = arith.constant 0 : i32
    %c0_i32_1 = arith.constant 0 : i32
    return %c0_i32, %c0_i32_0 : i32, i32
  }
  func.func @transform_4(%arg0: i32, %arg1: i32) -> (i32, i32) {
    %c0_i32 = arith.constant 0 : i32
    %c0_i32_0 = arith.constant 0 : i32
    %c0_i32_1 = arith.constant 0 : i32
    return %c0_i32, %c0_i32_0 : i32, i32
  }
  func.func @transform_5(%arg0: i32, %arg1: i32) -> (i32, i32) {
    %c0_i32 = arith.constant 0 : i32
    %c0_i32_0 = arith.constant 0 : i32
    %c0_i32_1 = arith.constant 0 : i32
    return %c0_i32, %c0_i32_0 : i32, i32
  }
  func.func @transform_6(%arg0: i32, %arg1: i32) -> (i32, i32) {
    %c0_i32 = arith.constant 0 : i32
    %c0_i32_0 = arith.constant 0 : i32
    %c0_i32_1 = arith.constant 0 : i32
    return %c0_i32, %c0_i32_0 : i32, i32
  }
  func.func @transform_7(%arg0: i32, %arg1: i32) -> (i32, i32, i32) {
    %c0_i32 = arith.constant 0 : i32
    %c0_i32_0 = arith.constant 0 : i32
    return %arg0, %arg1, %c0_i32 : i32, i32, i32
  }
  func.func @transform_8(%arg0: i32, %arg1: i32) -> (i32, i32, i32) {
    %c0_i32 = arith.constant 0 : i32
    %c0_i32_0 = arith.constant 0 : i32
    return %arg0, %arg1, %c0_i32 : i32, i32, i32
  }
}

module attributes {stable_mosaic.version = 11 : i64} {
  func.func @kv_proj_kernel(%arg0: i32, %arg1: i32, %arg2: memref<1x8x32xf32, #tpu.memory_space<vmem>>, %arg3: memref<1x32xf32, #tpu.memory_space<vmem>>, %arg4: memref<1x32xf32, #tpu.memory_space<vmem>>, %arg5: memref<32x32xbf16, #tpu.memory_space<vmem>>, %arg6: memref<1x32xf32, #tpu.memory_space<vmem>>, %arg7: memref<32x32xbf16, #tpu.memory_space<vmem>>, %arg8: memref<1x32xf32, #tpu.memory_space<vmem>>, %arg9: memref<1x8x32xf32, #tpu.memory_space<vmem>>, %arg10: memref<1x8x32xf32, #tpu.memory_space<vmem>>) attributes {dimension_semantics = [#tpu.dimension_semantics<parallel>, #tpu.dimension_semantics<parallel>], iteration_bounds = array<i64: 2, 1>, scalar_prefetch = 0 : i64, scratch_operands = 0 : i64, tpu.core_type = #tpu.core_type<tc>, window_params = [{transform_indices = @transform_0, window_bounds = array<i64: 1, 8, 32>}, {pipeline_mode = #tpu.pipeline_mode<synchronous>, transform_indices = @transform_1, window_bounds = array<i64: 1, 32>}, {pipeline_mode = #tpu.pipeline_mode<synchronous>, transform_indices = @transform_2, window_bounds = array<i64: 1, 32>}, {pipeline_mode = #tpu.pipeline_mode<synchronous>, transform_indices = @transform_3, window_bounds = array<i64: 32, 32>}, {pipeline_mode = #tpu.pipeline_mode<synchronous>, transform_indices = @transform_4, window_bounds = array<i64: 1, 32>}, {pipeline_mode = #tpu.pipeline_mode<synchronous>, transform_indices = @transform_5, window_bounds = array<i64: 32, 32>}, {pipeline_mode = #tpu.pipeline_mode<synchronous>, transform_indices = @transform_6, window_bounds = array<i64: 1, 32>}, {transform_indices = @transform_7, window_bounds = array<i64: 1, 8, 32>}, {transform_indices = @transform_8, window_bounds = array<i64: 1, 8, 32>}]} {
    %c0 = arith.constant 0 : index
    %c0_0 = arith.constant 0 : index
    %c0_1 = arith.constant 0 : index
    %0 = vector.load %arg2[%c0, %c0_0, %c0_1] : memref<1x8x32xf32, #tpu.memory_space<vmem>>, vector<1x8x32xf32>
    %1 = vector.shape_cast %0 : vector<1x8x32xf32> to vector<8x32xf32>
    %c0_2 = arith.constant 0 : index
    %c0_3 = arith.constant 0 : index
    %2 = vector.load %arg3[%c0_2, %c0_3] : memref<1x32xf32, #tpu.memory_space<vmem>>, vector<1x32xf32>
    %c0_4 = arith.constant 0 : index
    %c0_5 = arith.constant 0 : index
    %3 = vector.load %arg4[%c0_4, %c0_5] : memref<1x32xf32, #tpu.memory_space<vmem>>, vector<1x32xf32>
    %cst = arith.constant dense<0.000000e+00> : vector<8xf32>
    %4 = vector.multi_reduction <add>, %1, %cst [1] : vector<8x32xf32> to vector<8xf32>
    %5 = vector.shape_cast %4 : vector<8xf32> to vector<8x1xf32>
    %cst_6 = arith.constant 3.200000e+01 : f32
    %6 = vector.broadcast %cst_6 : f32 to vector<8x1xf32>
    %7 = arith.divf %5, %6 : vector<8x1xf32>
    %8 = vector.broadcast %7 : vector<8x1xf32> to vector<8x32xf32>
    %9 = arith.subf %1, %8 : vector<8x32xf32>
    %10 = arith.mulf %9, %9 : vector<8x32xf32>
    %cst_7 = arith.constant dense<0.000000e+00> : vector<8xf32>
    %11 = vector.multi_reduction <add>, %10, %cst_7 [1] : vector<8x32xf32> to vector<8xf32>
    %12 = vector.shape_cast %11 : vector<8xf32> to vector<8x1xf32>
    %cst_8 = arith.constant 3.200000e+01 : f32
    %13 = vector.broadcast %cst_8 : f32 to vector<8x1xf32>
    %14 = arith.divf %12, %13 : vector<8x1xf32>
    %15 = vector.broadcast %7 : vector<8x1xf32> to vector<8x32xf32>
    %16 = arith.subf %1, %15 : vector<8x32xf32>
    %cst_9 = arith.constant 9.99999997E-7 : f32
    %17 = vector.broadcast %cst_9 : f32 to vector<8x1xf32>
    %18 = arith.addf %14, %17 : vector<8x1xf32>
    %19 = math.rsqrt %18 : vector<8x1xf32>
    %20 = vector.broadcast %19 : vector<8x1xf32> to vector<8x32xf32>
    %21 = arith.mulf %16, %20 : vector<8x32xf32>
    %22 = vector.broadcast %2 : vector<1x32xf32> to vector<8x32xf32>
    %23 = arith.mulf %21, %22 : vector<8x32xf32>
    %24 = vector.broadcast %3 : vector<1x32xf32> to vector<8x32xf32>
    %25 = arith.addf %23, %24 : vector<8x32xf32>
    %26 = arith.truncf %25 : vector<8x32xf32> to vector<8x32xbf16>
    %c0_10 = arith.constant 0 : index
    %c0_11 = arith.constant 0 : index
    %27 = vector.load %arg5[%c0_10, %c0_11] : memref<32x32xbf16, #tpu.memory_space<vmem>>, vector<32x32xbf16>
    %cst_12 = arith.constant dense<0.000000e+00> : vector<8x32xf32>
    %28 = tpu.matmul %26, %27, %cst_12 {dimension_numbers = #tpu.dot_dimension_numbers<[1], [0], [0], [1], [0, 0, 1, 1], [], []>} : vector<8x32xbf16>, vector<32x32xbf16>, vector<8x32xf32> -> vector<8x32xf32>
    %c0_13 = arith.constant 0 : index
    %c0_14 = arith.constant 0 : index
    %29 = vector.load %arg6[%c0_13, %c0_14] : memref<1x32xf32, #tpu.memory_space<vmem>>, vector<1x32xf32>
    %30 = vector.broadcast %29 : vector<1x32xf32> to vector<8x32xf32>
    %31 = arith.addf %28, %30 : vector<8x32xf32>
    %c0_15 = arith.constant 0 : index
    %c0_16 = arith.constant 0 : index
    %c0_17 = arith.constant 0 : index
    %32 = vector.load %arg9[%c0_15, %c0_16, %c0_17] : memref<1x8x32xf32, #tpu.memory_space<vmem>>, vector<1x8x32xf32>
    %33 = vector.shape_cast %32 : vector<1x8x32xf32> to vector<8x32xf32>
    %34 = vector.shape_cast %31 : vector<8x32xf32> to vector<1x8x32xf32>
    tpu.vector_store %arg9[%c0_15, %c0_16, %c0_17], %34 {strides = array<i32>} : memref<1x8x32xf32, #tpu.memory_space<vmem>>, vector<1x8x32xf32>,
    %c0_18 = arith.constant 0 : index
    %c0_19 = arith.constant 0 : index
    %35 = vector.load %arg7[%c0_18, %c0_19] : memref<32x32xbf16, #tpu.memory_space<vmem>>, vector<32x32xbf16>
    %cst_20 = arith.constant dense<0.000000e+00> : vector<8x32xf32>
    %36 = tpu.matmul %26, %35, %cst_20 {dimension_numbers = #tpu.dot_dimension_numbers<[1], [0], [0], [1], [0, 0, 1, 1], [], []>} : vector<8x32xbf16>, vector<32x32xbf16>, vector<8x32xf32> -> vector<8x32xf32>
    %c0_21 = arith.constant 0 : index
    %c0_22 = arith.constant 0 : index
    %37 = vector.load %arg8[%c0_21, %c0_22] : memref<1x32xf32, #tpu.memory_space<vmem>>, vector<1x32xf32>
    %38 = vector.broadcast %37 : vector<1x32xf32> to vector<8x32xf32>
    %39 = arith.addf %36, %38 : vector<8x32xf32>
    %c0_23 = arith.constant 0 : index
    %c0_24 = arith.constant 0 : index
    %c0_25 = arith.constant 0 : index
    %40 = vector.load %arg10[%c0_23, %c0_24, %c0_25] : memref<1x8x32xf32, #tpu.memory_space<vmem>>, vector<1x8x32xf32>
    %41 = vector.shape_cast %40 : vector<1x8x32xf32> to vector<8x32xf32>
    %42 = vector.shape_cast %39 : vector<8x32xf32> to vector<1x8x32xf32>
    tpu.vector_store %arg10[%c0_23, %c0_24, %c0_25], %42 {strides = array<i32>} : memref<1x8x32xf32, #tpu.memory_space<vmem>>, vector<1x8x32xf32>,
    return
  }
  func.func @transform_0(%arg0: i32, %arg1: i32) -> (i32, i32, i32) {
    %c0_i32 = arith.constant 0 : i32
    %c0_i32_0 = arith.constant 0 : i32
    return %arg0, %arg1, %c0_i32 : i32, i32, i32
  }
  func.func @transform_1(%arg0: i32, %arg1: i32) -> (i32, i32) {
    %c0_i32 = arith.constant 0 : i32
    %c0_i32_0 = arith.constant 0 : i32
    %c0_i32_1 = arith.constant 0 : i32
    return %c0_i32, %c0_i32_0 : i32, i32
  }
  func.func @transform_2(%arg0: i32, %arg1: i32) -> (i32, i32) {
    %c0_i32 = arith.constant 0 : i32
    %c0_i32_0 = arith.constant 0 : i32
    %c0_i32_1 = arith.constant 0 : i32
    return %c0_i32, %c0_i32_0 : i32, i32
  }
  func.func @transform_3(%arg0: i32, %arg1: i32) -> (i32, i32) {
    %c0_i32 = arith.constant 0 : i32
    %c0_i32_0 = arith.constant 0 : i32
    %c0_i32_1 = arith.constant 0 : i32
    return %c0_i32, %c0_i32_0 : i32, i32
  }
  func.func @transform_4(%arg0: i32, %arg1: i32) -> (i32, i32) {
    %c0_i32 = arith.constant 0 : i32
    %c0_i32_0 = arith.constant 0 : i32
    %c0_i32_1 = arith.constant 0 : i32
    return %c0_i32, %c0_i32_0 : i32, i32
  }
  func.func @transform_5(%arg0: i32, %arg1: i32) -> (i32, i32) {
    %c0_i32 = arith.constant 0 : i32
    %c0_i32_0 = arith.constant 0 : i32
    %c0_i32_1 = arith.constant 0 : i32
    return %c0_i32, %c0_i32_0 : i32, i32
  }
  func.func @transform_6(%arg0: i32, %arg1: i32) -> (i32, i32) {
    %c0_i32 = arith.constant 0 : i32
    %c0_i32_0 = arith.constant 0 : i32
    %c0_i32_1 = arith.constant 0 : i32
    return %c0_i32, %c0_i32_0 : i32, i32
  }
  func.func @transform_7(%arg0: i32, %arg1: i32) -> (i32, i32, i32) {
    %c0_i32 = arith.constant 0 : i32
    %c0_i32_0 = arith.constant 0 : i32
    return %arg0, %arg1, %c0_i32 : i32, i32, i32
  }
  func.func @transform_8(%arg0: i32, %arg1: i32) -> (i32, i32, i32) {
    %c0_i32 = arith.constant 0 : i32
    %c0_i32_0 = arith.constant 0 : i32
    return %arg0, %arg1, %c0_i32 : i32, i32, i32
  }
}

</mosaic_0001>

<llo_original>
// kernel: tpu_custom_call.1
$region0: #{tpu_custom_call.1}
  #allocation0 [shape = 'u32[]', space=smem, size = 0x4, offset = 0x4, fixed_abs, tag = 'smem constant byte address 0x4 - core index']
  #allocation1 [shape = 'u32[144,128]{1,0:T(1,128)}', space=vmem, size = 0x12000, scoped, tag = 'internal scratch']
  %s0 = inlined_call_operand.hbm [shape: f32[2,8,32], index: 0, kind: input, shape index: {}]
  %s1 = inlined_call_operand.vmem [shape: f32[1,32], index: 1, kind: input, shape index: {}]
  %s2 = inlined_call_operand.vmem [shape: f32[1,32], index: 2, kind: input, shape index: {}]
  %s3 = inlined_call_operand.hbm [shape: bf16[32,32], index: 3, kind: input, shape index: {}]
  %s4 = inlined_call_operand.hbm [shape: f32[1,32], index: 4, kind: input, shape index: {}]
  %s5 = inlined_call_operand.vmem [shape: bf16[32,32], index: 5, kind: input, shape index: {}]
  %s6 = inlined_call_operand.vmem [shape: f32[1,32], index: 6, kind: input, shape index: {}]
  %s7 = inlined_call_operand.hbm [shape: f32[2,8,32], index: 7, kind: output, shape index: {0}]
  %s8 = inlined_call_operand.hbm [shape: f32[2,8,32], index: 8, kind: output, shape index: {1}]
  %9 = xla_tuple %s7, %s8
  %s10 = sld [smem:[#allocation0]]
  $region81: #{tpu_custom_call.1} parent=0
    _
  %s12 = ssub.s32 1, %s10
  %s13 = scalar_select 0, %s12, %s10
  $region1: #{tpu_custom_call.1} parent=0
    #allocation2 [shape = 'u8[8192]{0}', space=vmem, size = 0x2000, scoped, tag = 'input window, operand 0']
    #allocation3 [shape = 's32[2]{0}', space=sflag, size = 0x8, scoped, tag = 'scoped memory for tpu_custom_call.1']
    #allocation4 [shape = 's32[2]{0}', space=sflag, size = 0x8, scoped, tag = 'scoped memory for tpu_custom_call.1']
    #allocation5 [shape = 'u8[8192]{0}', space=vmem, size = 0x2000, scoped, tag = 'input window, operand 3, single buffered']
    #allocation6 [shape = 's32[1]{0}', space=sflag, size = 0x4, scoped, tag = 'scoped memory for tpu_custom_call.1']
    #allocation7 [shape = 'u8[512]{0}', space=vmem, size = 0x400, scoped, tag = 'input window, operand 4, single buffered']
    #allocation8 [shape = 'u8[8192]{0}', space=vmem, size = 0x2000, scoped, tag = 'output window, operand 0']
    #allocation9 [shape = 'u8[8192]{0}', space=vmem, size = 0x2000, scoped, tag = 'output window, operand 1']
    #allocation10 [shape = 's32[2]{0}', space=sflag, size = 0x8, scoped, tag = 'scoped memory for tpu_custom_call.1']
    %14 = vsyncpa [#allocation3], 0
    %s15 = scalar_lea.sflag [#allocation3], 1
    %16 = vsyncpa %s15, 0
    %17 = vsyncpa [#allocation6], 0
    %18 = vsyncpa [#allocation4], 0
    %s19 = scalar_lea.sflag [#allocation4], 1
    %20 = vsyncpa %s19, 0
    %21 = vsyncpa [#allocation10], 0
    %s22 = scalar_lea.sflag [#allocation10], 1
    %23 = vsyncpa %s22, 0
    loop: start=0, step=1, limit=4
    $region2: #{tpu_custom_call.1} parent=1 // loop_pre_header
      _
    $region3: #{tpu_custom_call.1} parent=1 // loop_header
      %s25 = sphi 0, %s29
      %p26 = scmp.ge.s32.totalorder %s25, 4
      %s32 = sphi 0, %s44
      %s33 = sphi 0, %s40
      %s34 = sphi 0, %s32
      %s35 = sphi 0, %s33
      %s36 = sphi 0, %s34
      %s37 = sphi 0, %s35
      %s49 = sphi 0, %s51
      %s52 = sphi 0, %s49
      %s53 = sphi 0, %s52
      %s69 = sphi 0, %s53
      %s73 = sphi 0, %s73
      %s75 = sphi 0, %s73
      %s76 = sphi 0, %s75
      %s90 = sphi 0, %s76
      %s94 = sphi 0, %s94
      %s96 = sphi 0, %s94
      %s97 = sphi 0, %s96
      %s111 = sphi 0, %s97
      %s115 = sphi 0, %s115
      %s117 = sphi 0, %s115
      %s118 = sphi 0, %s117
      %s132 = sphi 0, %s118
      %s136 = sphi 0, %s136
      %s138 = sphi 0, %s136
      %s139 = sphi 0, %s138
      %s153 = sphi 0, %s139
      %s157 = sphi 0, %s157
      %s159 = sphi 0, %s157
      %s160 = sphi 0, %s159
      %s174 = sphi 0, %s160
      %s178 = sphi 0, %s178
      %s180 = sphi 0, %s178
      %s181 = sphi 0, %s180
      %s195 = sphi 0, %s181
      %s203 = sphi 0, %s205
      %s206 = sphi 0, %s203
      %s207 = sphi 0, %s206
      %s223 = sphi 0, %s207
      %s231 = sphi 0, %s233
      %s234 = sphi 0, %s231
      %s235 = sphi 0, %s234
      %s251 = sphi 0, %s235
    $region4: #{tpu_custom_call.1} parent=1 // loop_header_branch
      %28 = sbr.rel (%p26) target = $region8
    $region5: #{tpu_custom_call.1} parent=1 // loop_body
      %s30 = ssub.s32 %s25, 1
      %s31 = ssub.s32 %s25, 2
      %s38 = sadd.s32 1, %s33
      %p39 = scmp.ge.s32.totalorder %s38, 1
      %s40 = scalar_select %p39, 0, %s38
      %s41 = sadd.s32 1, %s32
      %s42 = scalar_select %p39, %s41, %s32
      %p43 = scmp.ge.s32.totalorder %s42, 2
      %s44 = scalar_select %p43, 0, %s42
      %s45 = ssub.s32 %s32, %s44
      %s46 = ssub.s32 %s33, %s40
      %s47 = sor.u32 %s45, %s46
      %p48 = scmp.eq.s32.totalorder %s47, 0
      %s50 = sadd.s32 %s49, 1
      %s51 = scalar_select %p48, %s49, %s50
      %p54 = pneg %p48
      %p55 = scmp.eq.s32.totalorder %s25, 1
      %p56 = por %p54, %p55
      %p57 = scmp.ne.s32.totalorder %s49, %s52
      %p58 = scmp.eq.s32.totalorder %s25, 0
      %p59 = por %p57, %p58
      %p60 = scmp.ne.s32.totalorder %s49, %s52
      %p61 = scmp.eq.s32.totalorder %s30, 1
      %p62 = por %p60, %p61
      %p63 = scmp.ne.s32.totalorder %s52, %s53
      %p64 = scmp.eq.s32.totalorder %s30, 0
      %p65 = por %p63, %p64
      %p66 = scmp.ne.s32.totalorder %s52, %s53
      %p67 = scmp.eq.s32.totalorder %s31, 1
      %p68 = por %p66, %p67
      %p70 = scmp.ne.s32.totalorder %s53, %s69
      %p71 = scmp.eq.s32.totalorder %s31, 0
      %p72 = por %p70, %p71
      %s74 = sadd.s32 %s73, 1
      %p77 = scmp.eq.s32.totalorder %s25, 1
      %p78 = scmp.ne.s32.totalorder %s73, %s75
      %p79 = scmp.eq.s32.totalorder %s25, 0
      %p80 = por %p78, %p79
      %p81 = scmp.ne.s32.totalorder %s73, %s75
      %p82 = scmp.eq.s32.totalorder %s30, 1
      %p83 = por %p81, %p82
      %p84 = scmp.ne.s32.totalorder %s75, %s76
      %p85 = scmp.eq.s32.totalorder %s30, 0
      %p86 = por %p84, %p85
      %p87 = scmp.ne.s32.totalorder %s75, %s76
      %p88 = scmp.eq.s32.totalorder %s31, 1
      %p89 = por %p87, %p88
      %p91 = scmp.ne.s32.totalorder %s76, %s90
      %p92 = scmp.eq.s32.totalorder %s31, 0
      %p93 = por %p91, %p92
      %s95 = sadd.s32 %s94, 1
      %p98 = scmp.eq.s32.totalorder %s25, 1
      %p99 = scmp.ne.s32.totalorder %s94, %s96
      %p100 = scmp.eq.s32.totalorder %s25, 0
      %p101 = por %p99, %p100
      %p102 = scmp.ne.s32.totalorder %s94, %s96
      %p103 = scmp.eq.s32.totalorder %s30, 1
      %p104 = por %p102, %p103
      %p105 = scmp.ne.s32.totalorder %s96, %s97
      %p106 = scmp.eq.s32.totalorder %s30, 0
      %p107 = por %p105, %p106
      %p108 = scmp.ne.s32.totalorder %s96, %s97
      %p109 = scmp.eq.s32.totalorder %s31, 1
      %p110 = por %p108, %p109
      %p112 = scmp.ne.s32.totalorder %s97, %s111
      %p113 = scmp.eq.s32.totalorder %s31, 0
      %p114 = por %p112, %p113
      %s116 = sadd.s32 %s115, 1
      %p119 = scmp.eq.s32.totalorder %s25, 1
      %p120 = scmp.ne.s32.totalorder %s115, %s117
      %p121 = scmp.eq.s32.totalorder %s25, 0
      %p122 = por %p120, %p121
      %p123 = scmp.ne.s32.totalorder %s115, %s117
      %p124 = scmp.eq.s32.totalorder %s30, 1
      %p125 = por %p123, %p124
      %p126 = scmp.ne.s32.totalorder %s117, %s118
      %p127 = scmp.eq.s32.totalorder %s30, 0
      %p128 = por %p126, %p127
      %p129 = scmp.ne.s32.totalorder %s117, %s118
      %p130 = scmp.eq.s32.totalorder %s31, 1
      %p131 = por %p129, %p130
      %p133 = scmp.ne.s32.totalorder %s118, %s132
      %p134 = scmp.eq.s32.totalorder %s31, 0
      %p135 = por %p133, %p134
      %s137 = sadd.s32 %s136, 1
      %p140 = scmp.eq.s32.totalorder %s25, 1
      %p141 = scmp.ne.s32.totalorder %s136, %s138
      %p142 = scmp.eq.s32.totalorder %s25, 0
      %p143 = por %p141, %p142
      %p144 = scmp.ne.s32.totalorder %s136, %s138
      %p145 = scmp.eq.s32.totalorder %s30, 1
      %p146 = por %p144, %p145
      %p147 = scmp.ne.s32.totalorder %s138, %s139
      %p148 = scmp.eq.s32.totalorder %s30, 0
      %p149 = por %p147, %p148
      %p150 = scmp.ne.s32.totalorder %s138, %s139
      %p151 = scmp.eq.s32.totalorder %s31, 1
      %p152 = por %p150, %p151
      %p154 = scmp.ne.s32.totalorder %s139, %s153
      %p155 = scmp.eq.s32.totalorder %s31, 0
      %p156 = por %p154, %p155
      %s158 = sadd.s32 %s157, 1
      %p161 = scmp.eq.s32.totalorder %s25, 1
      %p162 = scmp.ne.s32.totalorder %s157, %s159
      %p163 = scmp.eq.s32.totalorder %s25, 0
      %p164 = por %p162, %p163
      %p165 = scmp.ne.s32.totalorder %s157, %s159
      %p166 = scmp.eq.s32.totalorder %s30, 1
      %p167 = por %p165, %p166
      %p168 = scmp.ne.s32.totalorder %s159, %s160
      %p169 = scmp.eq.s32.totalorder %s30, 0
      %p170 = por %p168, %p169
      %p171 = scmp.ne.s32.totalorder %s159, %s160
      %p172 = scmp.eq.s32.totalorder %s31, 1
      %p173 = por %p171, %p172
      %p175 = scmp.ne.s32.totalorder %s160, %s174
      %p176 = scmp.eq.s32.totalorder %s31, 0
      %p177 = por %p175, %p176
      %s179 = sadd.s32 %s178, 1
      %p182 = scmp.eq.s32.totalorder %s25, 1
      %p183 = scmp.ne.s32.totalorder %s178, %s180
      %p184 = scmp.eq.s32.totalorder %s25, 0
      %p185 = por %p183, %p184
      %p186 = scmp.ne.s32.totalorder %s178, %s180
      %p187 = scmp.eq.s32.totalorder %s30, 1
      %p188 = por %p186, %p187
      %p189 = scmp.ne.s32.totalorder %s180, %s181
      %p190 = scmp.eq.s32.totalorder %s30, 0
      %p191 = por %p189, %p190
      %p192 = scmp.ne.s32.totalorder %s180, %s181
      %p193 = scmp.eq.s32.totalorder %s31, 1
      %p194 = por %p192, %p193
      %p196 = scmp.ne.s32.totalorder %s181, %s195
      %p197 = scmp.eq.s32.totalorder %s31, 0
      %p198 = por %p196, %p197
      %s199 = ssub.s32 %s32, %s44
      %s200 = ssub.s32 %s33, %s40
      %s201 = sor.u32 %s199, %s200
      %p202 = scmp.eq.s32.totalorder %s201, 0
      %s204 = sadd.s32 %s203, 1
      %s205 = scalar_select %p202, %s203, %s204
      %p208 = pneg %p202
      %p209 = scmp.eq.s32.totalorder %s25, 1
      %p210 = por %p208, %p209
      %p211 = scmp.ne.s32.totalorder %s203, %s206
      %p212 = scmp.eq.s32.totalorder %s25, 0
      %p213 = por %p211, %p212
      %p214 = scmp.ne.s32.totalorder %s203, %s206
      %p215 = scmp.eq.s32.totalorder %s30, 1
      %p216 = por %p214, %p215
      %p217 = scmp.ne.s32.totalorder %s206, %s207
      %p218 = scmp.eq.s32.totalorder %s30, 0
      %p219 = por %p217, %p218
      %p220 = scmp.ne.s32.totalorder %s206, %s207
      %p221 = scmp.eq.s32.totalorder %s31, 1
      %p222 = por %p220, %p221
      %p224 = scmp.ne.s32.totalorder %s207, %s223
      %p225 = scmp.eq.s32.totalorder %s31, 0
      %p226 = por %p224, %p225
      %s227 = ssub.s32 %s32, %s44
      %s228 = ssub.s32 %s33, %s40
      %s229 = sor.u32 %s227, %s228
      %p230 = scmp.eq.s32.totalorder %s229, 0
      %s232 = sadd.s32 %s231, 1
      %s233 = scalar_select %p230, %s231, %s232
      %p236 = pneg %p230
      %p237 = scmp.eq.s32.totalorder %s25, 1
      %p238 = por %p236, %p237
      %p239 = scmp.ne.s32.totalorder %s231, %s234
      %p240 = scmp.eq.s32.totalorder %s25, 0
      %p241 = por %p239, %p240
      %p242 = scmp.ne.s32.totalorder %s231, %s234
      %p243 = scmp.eq.s32.totalorder %s30, 1
      %p244 = por %p242, %p243
      %p245 = scmp.ne.s32.totalorder %s234, %s235
      %p246 = scmp.eq.s32.totalorder %s30, 0
      %p247 = por %p245, %p246
      %p248 = scmp.ne.s32.totalorder %s234, %s235
      %p249 = scmp.eq.s32.totalorder %s31, 1
      %p250 = por %p248, %p249
      %p252 = scmp.ne.s32.totalorder %s235, %s251
      %p253 = scmp.eq.s32.totalorder %s31, 0
      %p254 = por %p252, %p253
      %p255 = scmp.le.s32.totalorder 1, %s25
      %p256 = scmp.lt.s32.totalorder %s25, 3
      %p257 = pnand %p255, %p256
      %p258 = pneg %p257
      // Predicated region
      $region9: #{tpu_custom_call.1} parent=5 // pred_check
        _
      $region10: #{tpu_custom_call.1} parent=5 // pred_check_branch
        %260 = sbr.rel (%p257) target = $region12
      $region11: #{tpu_custom_call.1} parent=5 // pred_region
        %s261 = ssub.s32 %s25, 1
        // Predicated region
        $region13: #{tpu_custom_call.1} parent=11 // pred_check
          %p262 = pneg %p86
        $region14: #{tpu_custom_call.1} parent=11 // pred_check_branch
          %264 = sbr.rel (%p262) target = $region16
        $region15: #{tpu_custom_call.1} parent=11 // pred_region
          _
        $region16: #{tpu_custom_call.1} parent=11 // pred_fallthru
          _
        // Predicated region
        $region17: #{tpu_custom_call.1} parent=11 // pred_check
          %p265 = pneg %p107
        $region18: #{tpu_custom_call.1} parent=11 // pred_check_branch
          %267 = sbr.rel (%p265) target = $region20
        $region19: #{tpu_custom_call.1} parent=11 // pred_region
          _
        $region20: #{tpu_custom_call.1} parent=11 // pred_fallthru
          _
        // Predicated region
        $region21: #{tpu_custom_call.1} parent=11 // pred_check
          %p268 = pneg %p128
        $region22: #{tpu_custom_call.1} parent=11 // pred_check_branch
          %270 = sbr.rel (%p268) target = $region24
        $region23: #{tpu_custom_call.1} parent=11 // pred_region
          %s272 = ssub.s32 256, 256
          %273 = vsyncadd [#allocation6], %s272
          %s274 = sshll.u32 [#allocation5], 4
          %s275 = int_to_ptr.vmem [resolvable:$true] %s274
          %280 = dma.hbm_to_vmem [thread:$0]  %s3, 256, %s275, [#allocation6], 64, 64, 4
        $region24: #{tpu_custom_call.1} parent=11 // pred_fallthru
          _
        // Predicated region
        $region25: #{tpu_custom_call.1} parent=11 // pred_check
          %p281 = pneg %p149
        $region26: #{tpu_custom_call.1} parent=11 // pred_check_branch
          %283 = sbr.rel (%p281) target = $region28
        $region27: #{tpu_custom_call.1} parent=11 // pred_region
          %s285 = ssub.s32 16, 16
          %286 = vsyncadd [#allocation6], %s285
          %s288 = sshll.u32 [#allocation7], 4
          %s289 = int_to_ptr.vmem [resolvable:$true] %s288
          %291 = dma.hbm_to_vmem [thread:$0]  %s4, 16, %s289, [#allocation6]
        $region28: #{tpu_custom_call.1} parent=11 // pred_fallthru
          _
        // Predicated region
        $region29: #{tpu_custom_call.1} parent=11 // pred_check
          %p292 = pneg %p170
        $region30: #{tpu_custom_call.1} parent=11 // pred_check_branch
          %294 = sbr.rel (%p292) target = $region32
        $region31: #{tpu_custom_call.1} parent=11 // pred_region
          _
        $region32: #{tpu_custom_call.1} parent=11 // pred_fallthru
          _
        // Predicated region
        $region33: #{tpu_custom_call.1} parent=11 // pred_check
          %p295 = pneg %p191
        $region34: #{tpu_custom_call.1} parent=11 // pred_check_branch
          %297 = sbr.rel (%p295) target = $region36
        $region35: #{tpu_custom_call.1} parent=11 // pred_region
          _
        $region36: #{tpu_custom_call.1} parent=11 // pred_fallthru
          _
      $region12: #{tpu_custom_call.1} parent=5 // pred_fallthru
        _
      %p298 = scmp.lt.s32.totalorder %s25, 2
      // Predicated region
      $region37: #{tpu_custom_call.1} parent=5 // pred_check
        %p299 = pneg %p298
      $region38: #{tpu_custom_call.1} parent=5 // pred_check_branch
        %301 = sbr.rel (%p299) target = $region40
      $region39: #{tpu_custom_call.1} parent=5 // pred_region
        // Predicated region
        $region41: #{tpu_custom_call.1} parent=39 // pred_check
          %p302 = pneg %p59
        $region42: #{tpu_custom_call.1} parent=39 // pred_check_branch
          %304 = sbr.rel (%p302) target = $region44
        $region43: #{tpu_custom_call.1} parent=39 // pred_region
          %s305 = sand.u32 %s49, 1
          %s306 = scalar_lea.sflag [#allocation3], %s305
          %s307 = sand.u32 %s49, 1
          %s308 = smul.addr %s307, 8
          %s309 = scalar_lea.vmem [#allocation2], %s308
          %s311 = ssub.s32 128, 128
          %312 = vsyncadd %s306, %s311
          %s313 = sadd.s32 %s33, %s32
          %s314 = smul.addr %s313, 128
          %s315 = scalar_lea.hbm %s0, %s314
          %s317 = sshll.u32 %s309, 4
          %s318 = int_to_ptr.vmem [resolvable:$true] %s317
          %320 = dma.hbm_to_vmem [thread:$0]  %s315, 128, %s318, %s306
        $region44: #{tpu_custom_call.1} parent=39 // pred_fallthru
          _
      $region40: #{tpu_custom_call.1} parent=5 // pred_fallthru
        _
      %p321 = scmp.le.s32.totalorder 1, %s25
      %p322 = scmp.lt.s32.totalorder %s25, 3
      %p323 = pnand %p321, %p322
      %p324 = pneg %p323
      // Predicated region
      $region45: #{tpu_custom_call.1} parent=5 // pred_check
        _
      $region46: #{tpu_custom_call.1} parent=5 // pred_check_branch
        %326 = sbr.rel (%p323) target = $region48
      $region47: #{tpu_custom_call.1} parent=5 // pred_region
        %s327 = ssub.s32 %s25, 1
        %s328 = sand.u32 %s52, 1
        %s329 = scalar_lea.sflag [#allocation3], %s328
        %s330 = sand.u32 %s52, 1
        %s331 = smul.addr %s330, 8
        %s332 = scalar_lea.vmem [#allocation2], %s331
        // Predicated region
        $region49: #{tpu_custom_call.1} parent=47 // pred_check
          %p333 = pneg %p65
        $region50: #{tpu_custom_call.1} parent=47 // pred_check_branch
          %335 = sbr.rel (%p333) target = $region52
        $region51: #{tpu_custom_call.1} parent=47 // pred_region
          %336 = dma.done %s329, 128
        $region52: #{tpu_custom_call.1} parent=47 // pred_fallthru
          _
        // Predicated region
        $region53: #{tpu_custom_call.1} parent=47 // pred_check
          %p337 = pneg %p128
        $region54: #{tpu_custom_call.1} parent=47 // pred_check_branch
          %339 = sbr.rel (%p337) target = $region56
        $region55: #{tpu_custom_call.1} parent=47 // pred_region
          %340 = dma.done [#allocation6], 256
        $region56: #{tpu_custom_call.1} parent=47 // pred_fallthru
          _
        // Predicated region
        $region57: #{tpu_custom_call.1} parent=47 // pred_check
          %p341 = pneg %p149
        $region58: #{tpu_custom_call.1} parent=47 // pred_check_branch
          %343 = sbr.rel (%p341) target = $region60
        $region59: #{tpu_custom_call.1} parent=47 // pred_region
          %344 = dma.done [#allocation6], 16
        $region60: #{tpu_custom_call.1} parent=47 // pred_fallthru
          _
        %s345 = sand.u32 %s52, 1
        %s346 = scalar_lea.sflag [#allocation3], %s345
        %s347 = sand.u32 %s52, 1
        %s348 = smul.addr %s347, 8
        %s349 = scalar_lea.vmem [#allocation2], %s348
        %p350 = pneg %p65
        %p351 = pneg %p62
        %p352 = pneg %p86
        %p353 = pneg %p83
        %p354 = pneg %p107
        %p355 = pneg %p104
        %p356 = pneg %p128
        %p357 = pneg %p125
        %p358 = pneg %p149
        %p359 = pneg %p146
        %p360 = pneg %p170
        %p361 = pneg %p167
        %p362 = pneg %p191
        %p363 = pneg %p188
        %p364 = pneg %p219
        %p365 = pneg %p216
        %s366 = sand.u32 %s206, 1
        %s367 = scalar_lea.sflag [#allocation4], %s366
        %s368 = sand.u32 %s206, 1
        %s369 = smul.addr %s368, 8
        %s370 = scalar_lea.vmem [#allocation8], %s369
        %p371 = pneg %p247
        %p372 = pneg %p244
        %s373 = sand.u32 %s234, 1
        %s374 = scalar_lea.sflag [#allocation10], %s373
        %s375 = sand.u32 %s234, 1
        %s376 = smul.addr %s375, 8
        %s377 = scalar_lea.vmem [#allocation9], %s376
        %v379 = vld [vmem:[%s332] sm:$0xff]
        %v380 = vld [vmem:[%s1] sm:$0x1]
        %v381 = vld [vmem:[%s2] sm:$0x1]
        %vm382 = vcmask 261120
        %v383 = vsel %vm382, %v379, 0.0
        %384 = vadd.xlane.f32.xlu0 %v383
        %v385 = vpop.xlane.xlu0 %384
        %v386 = vrcp.pop 32.0
        %v387 = vmul.f32 %v385, %v386
        %v388 = vsub.f32 %v379, %v387
        %v389 = vmul.f32 %v388, %v388
        %v390 = vsel %vm382, %v389, 0.0
        %391 = vadd.xlane.f32.xlu0 %v390
        %v392 = vpop.xlane.xlu0 %391
        %v393 = vmul.f32 %v392, %v386
        %v394 = vadd.f32 %v393, 1e-06
        %v395 = vrsqrt.pop %v394
        %v396 = vmul.f32 %v388, %v395
        %v398 = vlaneseq
        %v399 = vshrl.u32 %v398, 7
        %v400 = vsub.s32 0, %v399
        %v401 = vrot.slane %v380, %v400
        %v403 = vmul.f32 %v396, %v401
        %v405 = vlaneseq
        %v406 = vshrl.u32 %v405, 7
        %v407 = vsub.s32 0, %v406
        %v408 = vrot.slane %v381, %v407
        %v410 = vadd.f32 %v403, %v408
        %v411 = vpack.c.bf16 %v410, %v410
        %v412 = vld [vmem:[#allocation5] sm:$0xf]
        %v413 = vld [vmem:[#allocation5 + $0x4] sm:$0xf]
        %v414 = vld [vmem:[#allocation5 + $0x8] sm:$0xf]
        %v415 = vld [vmem:[#allocation5 + $0xc] sm:$0xf]
        %v416 = vld [vmem:[#allocation7] sm:$0x1]
        %v418 = vlaneseq
        %v419 = vshrl.u32 %v418, 7
        %v420 = vsub.s32 0, %v419
        %v421 = vrot.slane %v416, %v420
        %v427 = vunpack.c.l.b16 %v412
        %v428 = vunpack.c.l.b16 %v413
        %v429 = vunpack.c.l.b16 %v414
        %v430 = vunpack.c.l.b16 %v415
        %v431 = vpack.c.b16 %v428, %v427
        %v432 = vpack.c.b16 %v430, %v429
        %v436 = vsel %vm382, %v411, 0
        %438 = vmatprep.subr.bf16.mxu0 0
        %439 = vmatpush1.bf16.msra.mxu0 %v431
        %440 = vmatprep.subr.bf16.mxu0 0
        %441 = vmatpush1.bf16.msra.mxu0 %v432
        %442 = vmatprep.subr.bf16.mxu0 0
        %443 = vmatpush1.bf16.msra.mxu0 0
        %444 = vmatprep.subr.bf16.mxu0 0
        %445 = vmatpush1.bf16.msra.mxu0 0
        %446 = vmatprep.subr.bf16.mxu0 0
        %447 = vmatpush1.bf16.msra.mxu0 0
        %448 = vmatprep.subr.bf16.mxu0 0
        %449 = vmatpush1.bf16.msra.mxu0 0
        %450 = vmatprep.subr.bf16.mxu0 0
        %451 = vmatpush1.bf16.msra.mxu0 0
        %452 = vmatprep.subr.bf16.mxu0 0
        %453 = vmatpush1.bf16.msra.mxu0 0
        %454 = vmatprep.subr.bf16.mxu0 0
        %455 = vmatpush1.bf16.msra.mxu0 0
        %456 = vmatprep.subr.bf16.mxu0 0
        %457 = vmatpush1.bf16.msra.mxu0 0
        %458 = vmatprep.subr.bf16.mxu0 0
        %459 = vmatpush1.bf16.msra.mxu0 0
        %460 = vmatprep.subr.bf16.mxu0 0
        %461 = vmatpush1.bf16.msra.mxu0 0
        %462 = vmatprep.subr.bf16.mxu0 0
        %463 = vmatpush1.bf16.msra.mxu0 0
        %464 = vmatprep.subr.bf16.mxu0 0
        %465 = vmatpush1.bf16.msra.mxu0 0
        %466 = vmatprep.subr.bf16.mxu0 0
        %467 = vmatpush1.bf16.msra.mxu0 0
        %468 = vmatprep.subr.bf16.mxu0 0
        %469 = vmatpush1.bf16.msra.mxu0 0
        %470 = vmatprep.mubr.bf16.mxu0 0
        %471 = vmatmul.mubr.bf16.gmra.mrb[0].mxu0 %v436
        %v472 = vpop.f32.mrb[0].mxu0
        %v473 = vadd.f32 %v421, %v472
        %v474 = vpop.f32.mrb[0].mxu0
        %v475 = vpop.f32.mrb[0].mxu0
        %v476 = vpop.f32.mrb[0].mxu0
        %477 = vdwg.mxu0
        %478 = vst.msk [vmem:[%s370] sm:$0xff] %vm382, %v473
        %v479 = vld [vmem:[%s5] sm:$0xf]
        %v480 = vld [vmem:[%s5 + $0x4] sm:$0xf]
        %v481 = vld [vmem:[%s5 + $0x8] sm:$0xf]
        %v482 = vld [vmem:[%s5 + $0xc] sm:$0xf]
        %v483 = vld [vmem:[%s6] sm:$0x1]
        %v485 = vlaneseq
        %v486 = vshrl.u32 %v485, 7
        %v487 = vsub.s32 0, %v486
        %v488 = vrot.slane %v483, %v487
        %v494 = vunpack.c.l.b16 %v479
        %v495 = vunpack.c.l.b16 %v480
        %v496 = vunpack.c.l.b16 %v481
        %v497 = vunpack.c.l.b16 %v482
        %v498 = vpack.c.b16 %v495, %v494
        %v499 = vpack.c.b16 %v497, %v496
        %502 = vmatprep.subr.bf16.mxu0 0
        %503 = vmatpush1.bf16.msra.mxu0 %v498
        %504 = vmatprep.subr.bf16.mxu0 0
        %505 = vmatpush1.bf16.msra.mxu0 %v499
        %506 = vmatprep.subr.bf16.mxu0 0
        %507 = vmatpush1.bf16.msra.mxu0 0
        %508 = vmatprep.subr.bf16.mxu0 0
        %509 = vmatpush1.bf16.msra.mxu0 0
        %510 = vmatprep.subr.bf16.mxu0 0
        %511 = vmatpush1.bf16.msra.mxu0 0
        %512 = vmatprep.subr.bf16.mxu0 0
        %513 = vmatpush1.bf16.msra.mxu0 0
        %514 = vmatprep.subr.bf16.mxu0 0
        %515 = vmatpush1.bf16.msra.mxu0 0
        %516 = vmatprep.subr.bf16.mxu0 0
        %517 = vmatpush1.bf16.msra.mxu0 0
        %518 = vmatprep.subr.bf16.mxu0 0
        %519 = vmatpush1.bf16.msra.mxu0 0
        %520 = vmatprep.subr.bf16.mxu0 0
        %521 = vmatpush1.bf16.msra.mxu0 0
        %522 = vmatprep.subr.bf16.mxu0 0
        %523 = vmatpush1.bf16.msra.mxu0 0
        %524 = vmatprep.subr.bf16.mxu0 0
        %525 = vmatpush1.bf16.msra.mxu0 0
        %526 = vmatprep.subr.bf16.mxu0 0
        %527 = vmatpush1.bf16.msra.mxu0 0
        %528 = vmatprep.subr.bf16.mxu0 0
        %529 = vmatpush1.bf16.msra.mxu0 0
        %530 = vmatprep.subr.bf16.mxu0 0
        %531 = vmatpush1.bf16.msra.mxu0 0
        %532 = vmatprep.subr.bf16.mxu0 0
        %533 = vmatpush1.bf16.msra.mxu0 0
        %534 = vmatprep.mubr.bf16.mxu0 0
        %535 = vmatmul.mubr.bf16.gmra.mrb[0].mxu0 %v436
        %v536 = vpop.f32.mrb[0].mxu0
        %v537 = vadd.f32 %v488, %v536
        %v538 = vpop.f32.mrb[0].mxu0
        %v539 = vpop.f32.mrb[0].mxu0
        %v540 = vpop.f32.mrb[0].mxu0
        %541 = vdwg.mxu0
        %542 = vst.msk [vmem:[%s377] sm:$0xff] %vm382, %v537
        %s543 = sand.u32 %s206, 1
        %s544 = scalar_lea.sflag [#allocation4], %s543
        %s545 = sand.u32 %s206, 1
        %s546 = smul.addr %s545, 8
        %s547 = scalar_lea.vmem [#allocation8], %s546
        %s548 = sand.u32 %s234, 1
        %s549 = scalar_lea.sflag [#allocation10], %s548
        %s550 = sand.u32 %s234, 1
        %s551 = smul.addr %s550, 8
        %s552 = scalar_lea.vmem [#allocation9], %s551
        // Predicated region
        $region61: #{tpu_custom_call.1} parent=47 // pred_check
          %p553 = pneg %p216
        $region62: #{tpu_custom_call.1} parent=47 // pred_check_branch
          %555 = sbr.rel (%p553) target = $region64
        $region63: #{tpu_custom_call.1} parent=47 // pred_region
          %s557 = ssub.s32 128, 128
          %558 = vsyncadd %s544, %s557
          %s559 = sadd.s32 %s35, %s34
          %s560 = smul.addr %s559, 128
          %s561 = scalar_lea.hbm %s7, %s560
          %s563 = sshll.u32 %s547, 4
          %s564 = int_to_ptr.vmem [resolvable:$true] %s563
          %566 = dma.vmem_to_hbm [thread:$0]  %s564, 128, %s561, %s544
        $region64: #{tpu_custom_call.1} parent=47 // pred_fallthru
          _
        // Predicated region
        $region65: #{tpu_custom_call.1} parent=47 // pred_check
          %p567 = pneg %p244
        $region66: #{tpu_custom_call.1} parent=47 // pred_check_branch
          %569 = sbr.rel (%p567) target = $region68
        $region67: #{tpu_custom_call.1} parent=47 // pred_region
          %s571 = ssub.s32 128, 128
          %572 = vsyncadd %s549, %s571
          %s573 = sadd.s32 %s35, %s34
          %s574 = smul.addr %s573, 128
          %s575 = scalar_lea.hbm %s8, %s574
          %s577 = sshll.u32 %s552, 4
          %s578 = int_to_ptr.vmem [resolvable:$true] %s577
          %580 = dma.vmem_to_hbm [thread:$0]  %s578, 128, %s575, %s549
        $region68: #{tpu_custom_call.1} parent=47 // pred_fallthru
          _
      $region48: #{tpu_custom_call.1} parent=5 // pred_fallthru
        _
      %p581 = scmp.le.s32.totalorder 2, %s25
      // Predicated region
      $region69: #{tpu_custom_call.1} parent=5 // pred_check
        %p582 = pneg %p581
      $region70: #{tpu_custom_call.1} parent=5 // pred_check_branch
        %584 = sbr.rel (%p582) target = $region72
      $region71: #{tpu_custom_call.1} parent=5 // pred_region
        %s585 = ssub.s32 %s25, 2
        // Predicated region
        $region73: #{tpu_custom_call.1} parent=71 // pred_check
          %p586 = pneg %p222
        $region74: #{tpu_custom_call.1} parent=71 // pred_check_branch
          %588 = sbr.rel (%p586) target = $region76
        $region75: #{tpu_custom_call.1} parent=71 // pred_region
          %s589 = sand.u32 %s207, 1
          %s590 = scalar_lea.sflag [#allocation4], %s589
          %s591 = sand.u32 %s207, 1
          %s592 = smul.addr %s591, 8
          %s593 = scalar_lea.vmem [#allocation8], %s592
          %594 = dma.done %s590, 128
        $region76: #{tpu_custom_call.1} parent=71 // pred_fallthru
          _
        // Predicated region
        $region77: #{tpu_custom_call.1} parent=71 // pred_check
          %p595 = pneg %p250
        $region78: #{tpu_custom_call.1} parent=71 // pred_check_branch
          %597 = sbr.rel (%p595) target = $region80
        $region79: #{tpu_custom_call.1} parent=71 // pred_region
          %s598 = sand.u32 %s235, 1
          %s599 = scalar_lea.sflag [#allocation10], %s598
          %s600 = sand.u32 %s235, 1
          %s601 = smul.addr %s600, 8
          %s602 = scalar_lea.vmem [#allocation9], %s601
          %603 = dma.done %s599, 128
        $region80: #{tpu_custom_call.1} parent=71 // pred_fallthru
          _
      $region72: #{tpu_custom_call.1} parent=5 // pred_fallthru
        _
    $region6: #{tpu_custom_call.1} parent=1 // loop_footer
      %s29 = sadd.s32 1, %s25
    $region7: #{tpu_custom_call.1} parent=1 // loop_footer_branch
      %24 = sbr.rel target = $region3
    $region8: #{tpu_custom_call.1} parent=1 // loop_exit
      _
    %604 = vsyncpa [#allocation3], 1
    %s605 = scalar_lea.sflag [#allocation3], 1
    %606 = vsyncpa %s605, 1
    %607 = vsyncpa [#allocation6], 1
    %608 = vsyncpa [#allocation4], 1
    %s609 = scalar_lea.sflag [#allocation4], 1
    %610 = vsyncpa %s609, 1
    %611 = vsyncpa [#allocation10], 1
    %s612 = scalar_lea.sflag [#allocation10], 1
    %613 = vsyncpa %s612, 1

// kernel: tpu_custom_call.1
$region0: #{tpu_custom_call.1}
  #allocation0 [shape = 'u32[]', space=smem, size = 0x4, offset = 0x4, fixed_abs, tag = 'smem constant byte address 0x4 - core index']
  #allocation1 [shape = 'u32[144,128]{1,0:T(1,128)}', space=vmem, size = 0x12000, scoped, tag = 'internal scratch']
  %s0 = inlined_call_operand.hbm [shape: f32[2,8,32], index: 0, kind: input, shape index: {}]
  %s1 = inlined_call_operand.vmem [shape: f32[1,32], index: 1, kind: input, shape index: {}]
  %s2 = inlined_call_operand.vmem [shape: f32[1,32], index: 2, kind: input, shape index: {}]
  %s3 = inlined_call_operand.hbm [shape: bf16[32,32], index: 3, kind: input, shape index: {}]
  %s4 = inlined_call_operand.hbm [shape: f32[1,32], index: 4, kind: input, shape index: {}]
  %s5 = inlined_call_operand.vmem [shape: bf16[32,32], index: 5, kind: input, shape index: {}]
  %s6 = inlined_call_operand.vmem [shape: f32[1,32], index: 6, kind: input, shape index: {}]
  %s7 = inlined_call_operand.hbm [shape: f32[2,8,32], index: 7, kind: output, shape index: {0}]
  %s8 = inlined_call_operand.hbm [shape: f32[2,8,32], index: 8, kind: output, shape index: {1}]
  %9 = xla_tuple %s7, %s8
  %s10 = sld [smem:[#allocation0]]
  $region81: #{tpu_custom_call.1} parent=0
    _
  %s12 = ssub.s32 1, %s10
  %s13 = scalar_select 0, %s12, %s10
  $region1: #{tpu_custom_call.1} parent=0
    #allocation2 [shape = 'u8[8192]{0}', space=vmem, size = 0x2000, scoped, tag = 'input window, operand 0']
    #allocation3 [shape = 's32[2]{0}', space=sflag, size = 0x8, scoped, tag = 'scoped memory for tpu_custom_call.1']
    #allocation4 [shape = 's32[2]{0}', space=sflag, size = 0x8, scoped, tag = 'scoped memory for tpu_custom_call.1']
    #allocation5 [shape = 'u8[8192]{0}', space=vmem, size = 0x2000, scoped, tag = 'input window, operand 3, single buffered']
    #allocation6 [shape = 's32[1]{0}', space=sflag, size = 0x4, scoped, tag = 'scoped memory for tpu_custom_call.1']
    #allocation7 [shape = 'u8[512]{0}', space=vmem, size = 0x400, scoped, tag = 'input window, operand 4, single buffered']
    #allocation8 [shape = 'u8[8192]{0}', space=vmem, size = 0x2000, scoped, tag = 'output window, operand 0']
    #allocation9 [shape = 'u8[8192]{0}', space=vmem, size = 0x2000, scoped, tag = 'output window, operand 1']
    #allocation10 [shape = 's32[2]{0}', space=sflag, size = 0x8, scoped, tag = 'scoped memory for tpu_custom_call.1']
    %14 = vsyncpa [#allocation3], 0
    %s15 = scalar_lea.sflag [#allocation3], 1
    %16 = vsyncpa %s15, 0
    %17 = vsyncpa [#allocation6], 0
    %18 = vsyncpa [#allocation4], 0
    %s19 = scalar_lea.sflag [#allocation4], 1
    %20 = vsyncpa %s19, 0
    %21 = vsyncpa [#allocation10], 0
    %s22 = scalar_lea.sflag [#allocation10], 1
    %23 = vsyncpa %s22, 0
    loop: start=0, step=1, limit=4
    $region2: #{tpu_custom_call.1} parent=1 // loop_pre_header
      _
    $region3: #{tpu_custom_call.1} parent=1 // loop_header
      %s25 = sphi 0, %s29
      %p26 = scmp.ge.s32.totalorder %s25, 4
      %s32 = sphi 0, %s44
      %s33 = sphi 0, %s40
      %s34 = sphi 0, %s32
      %s35 = sphi 0, %s33
      %s36 = sphi 0, %s34
      %s37 = sphi 0, %s35
      %s49 = sphi 0, %s51
      %s52 = sphi 0, %s49
      %s53 = sphi 0, %s52
      %s69 = sphi 0, %s53
      %s73 = sphi 0, %s73
      %s75 = sphi 0, %s73
      %s76 = sphi 0, %s75
      %s90 = sphi 0, %s76
      %s94 = sphi 0, %s94
      %s96 = sphi 0, %s94
      %s97 = sphi 0, %s96
      %s111 = sphi 0, %s97
      %s115 = sphi 0, %s115
      %s117 = sphi 0, %s115
      %s118 = sphi 0, %s117
      %s132 = sphi 0, %s118
      %s136 = sphi 0, %s136
      %s138 = sphi 0, %s136
      %s139 = sphi 0, %s138
      %s153 = sphi 0, %s139
      %s157 = sphi 0, %s157
      %s159 = sphi 0, %s157
      %s160 = sphi 0, %s159
      %s174 = sphi 0, %s160
      %s178 = sphi 0, %s178
      %s180 = sphi 0, %s178
      %s181 = sphi 0, %s180
      %s195 = sphi 0, %s181
      %s203 = sphi 0, %s205
      %s206 = sphi 0, %s203
      %s207 = sphi 0, %s206
      %s223 = sphi 0, %s207
      %s231 = sphi 0, %s233
      %s234 = sphi 0, %s231
      %s235 = sphi 0, %s234
      %s251 = sphi 0, %s235
    $region4: #{tpu_custom_call.1} parent=1 // loop_header_branch
      %28 = sbr.rel (%p26) target = $region8
    $region5: #{tpu_custom_call.1} parent=1 // loop_body
      %s30 = ssub.s32 %s25, 1
      %s31 = ssub.s32 %s25, 2
      %s38 = sadd.s32 1, %s33
      %p39 = scmp.ge.s32.totalorder %s38, 1
      %s40 = scalar_select %p39, 0, %s38
      %s41 = sadd.s32 1, %s32
      %s42 = scalar_select %p39, %s41, %s32
      %p43 = scmp.ge.s32.totalorder %s42, 2
      %s44 = scalar_select %p43, 0, %s42
      %s45 = ssub.s32 %s32, %s44
      %s46 = ssub.s32 %s33, %s40
      %s47 = sor.u32 %s45, %s46
      %p48 = scmp.eq.s32.totalorder %s47, 0
      %s50 = sadd.s32 %s49, 1
      %s51 = scalar_select %p48, %s49, %s50
      %p54 = pneg %p48
      %p55 = scmp.eq.s32.totalorder %s25, 1
      %p56 = por %p54, %p55
      %p57 = scmp.ne.s32.totalorder %s49, %s52
      %p58 = scmp.eq.s32.totalorder %s25, 0
      %p59 = por %p57, %p58
      %p60 = scmp.ne.s32.totalorder %s49, %s52
      %p61 = scmp.eq.s32.totalorder %s30, 1
      %p62 = por %p60, %p61
      %p63 = scmp.ne.s32.totalorder %s52, %s53
      %p64 = scmp.eq.s32.totalorder %s30, 0
      %p65 = por %p63, %p64
      %p66 = scmp.ne.s32.totalorder %s52, %s53
      %p67 = scmp.eq.s32.totalorder %s31, 1
      %p68 = por %p66, %p67
      %p70 = scmp.ne.s32.totalorder %s53, %s69
      %p71 = scmp.eq.s32.totalorder %s31, 0
      %p72 = por %p70, %p71
      %s74 = sadd.s32 %s73, 1
      %p77 = scmp.eq.s32.totalorder %s25, 1
      %p78 = scmp.ne.s32.totalorder %s73, %s75
      %p79 = scmp.eq.s32.totalorder %s25, 0
      %p80 = por %p78, %p79
      %p81 = scmp.ne.s32.totalorder %s73, %s75
      %p82 = scmp.eq.s32.totalorder %s30, 1
      %p83 = por %p81, %p82
      %p84 = scmp.ne.s32.totalorder %s75, %s76
      %p85 = scmp.eq.s32.totalorder %s30, 0
      %p86 = por %p84, %p85
      %p87 = scmp.ne.s32.totalorder %s75, %s76
      %p88 = scmp.eq.s32.totalorder %s31, 1
      %p89 = por %p87, %p88
      %p91 = scmp.ne.s32.totalorder %s76, %s90
      %p92 = scmp.eq.s32.totalorder %s31, 0
      %p93 = por %p91, %p92
      %s95 = sadd.s32 %s94, 1
      %p98 = scmp.eq.s32.totalorder %s25, 1
      %p99 = scmp.ne.s32.totalorder %s94, %s96
      %p100 = scmp.eq.s32.totalorder %s25, 0
      %p101 = por %p99, %p100
      %p102 = scmp.ne.s32.totalorder %s94, %s96
      %p103 = scmp.eq.s32.totalorder %s30, 1
      %p104 = por %p102, %p103
      %p105 = scmp.ne.s32.totalorder %s96, %s97
      %p106 = scmp.eq.s32.totalorder %s30, 0
      %p107 = por %p105, %p106
      %p108 = scmp.ne.s32.totalorder %s96, %s97
      %p109 = scmp.eq.s32.totalorder %s31, 1
      %p110 = por %p108, %p109
      %p112 = scmp.ne.s32.totalorder %s97, %s111
      %p113 = scmp.eq.s32.totalorder %s31, 0
      %p114 = por %p112, %p113
      %s116 = sadd.s32 %s115, 1
      %p119 = scmp.eq.s32.totalorder %s25, 1
      %p120 = scmp.ne.s32.totalorder %s115, %s117
      %p121 = scmp.eq.s32.totalorder %s25, 0
      %p122 = por %p120, %p121
      %p123 = scmp.ne.s32.totalorder %s115, %s117
      %p124 = scmp.eq.s32.totalorder %s30, 1
      %p125 = por %p123, %p124
      %p126 = scmp.ne.s32.totalorder %s117, %s118
      %p127 = scmp.eq.s32.totalorder %s30, 0
      %p128 = por %p126, %p127
      %p129 = scmp.ne.s32.totalorder %s117, %s118
      %p130 = scmp.eq.s32.totalorder %s31, 1
      %p131 = por %p129, %p130
      %p133 = scmp.ne.s32.totalorder %s118, %s132
      %p134 = scmp.eq.s32.totalorder %s31, 0
      %p135 = por %p133, %p134
      %s137 = sadd.s32 %s136, 1
      %p140 = scmp.eq.s32.totalorder %s25, 1
      %p141 = scmp.ne.s32.totalorder %s136, %s138
      %p142 = scmp.eq.s32.totalorder %s25, 0
      %p143 = por %p141, %p142
      %p144 = scmp.ne.s32.totalorder %s136, %s138
      %p145 = scmp.eq.s32.totalorder %s30, 1
      %p146 = por %p144, %p145
      %p147 = scmp.ne.s32.totalorder %s138, %s139
      %p148 = scmp.eq.s32.totalorder %s30, 0
      %p149 = por %p147, %p148
      %p150 = scmp.ne.s32.totalorder %s138, %s139
      %p151 = scmp.eq.s32.totalorder %s31, 1
      %p152 = por %p150, %p151
      %p154 = scmp.ne.s32.totalorder %s139, %s153
      %p155 = scmp.eq.s32.totalorder %s31, 0
      %p156 = por %p154, %p155
      %s158 = sadd.s32 %s157, 1
      %p161 = scmp.eq.s32.totalorder %s25, 1
      %p162 = scmp.ne.s32.totalorder %s157, %s159
      %p163 = scmp.eq.s32.totalorder %s25, 0
      %p164 = por %p162, %p163
      %p165 = scmp.ne.s32.totalorder %s157, %s159
      %p166 = scmp.eq.s32.totalorder %s30, 1
      %p167 = por %p165, %p166
      %p168 = scmp.ne.s32.totalorder %s159, %s160
      %p169 = scmp.eq.s32.totalorder %s30, 0
      %p170 = por %p168, %p169
      %p171 = scmp.ne.s32.totalorder %s159, %s160
      %p172 = scmp.eq.s32.totalorder %s31, 1
      %p173 = por %p171, %p172
      %p175 = scmp.ne.s32.totalorder %s160, %s174
      %p176 = scmp.eq.s32.totalorder %s31, 0
      %p177 = por %p175, %p176
      %s179 = sadd.s32 %s178, 1
      %p182 = scmp.eq.s32.totalorder %s25, 1
      %p183 = scmp.ne.s32.totalorder %s178, %s180
      %p184 = scmp.eq.s32.totalorder %s25, 0
      %p185 = por %p183, %p184
      %p186 = scmp.ne.s32.totalorder %s178, %s180
      %p187 = scmp.eq.s32.totalorder %s30, 1
      %p188 = por %p186, %p187
      %p189 = scmp.ne.s32.totalorder %s180, %s181
      %p190 = scmp.eq.s32.totalorder %s30, 0
      %p191 = por %p189, %p190
      %p192 = scmp.ne.s32.totalorder %s180, %s181
      %p193 = scmp.eq.s32.totalorder %s31, 1
      %p194 = por %p192, %p193
      %p196 = scmp.ne.s32.totalorder %s181, %s195
      %p197 = scmp.eq.s32.totalorder %s31, 0
      %p198 = por %p196, %p197
      %s199 = ssub.s32 %s32, %s44
      %s200 = ssub.s32 %s33, %s40
      %s201 = sor.u32 %s199, %s200
      %p202 = scmp.eq.s32.totalorder %s201, 0
      %s204 = sadd.s32 %s203, 1
      %s205 = scalar_select %p202, %s203, %s204
      %p208 = pneg %p202
      %p209 = scmp.eq.s32.totalorder %s25, 1
      %p210 = por %p208, %p209
      %p211 = scmp.ne.s32.totalorder %s203, %s206
      %p212 = scmp.eq.s32.totalorder %s25, 0
      %p213 = por %p211, %p212
      %p214 = scmp.ne.s32.totalorder %s203, %s206
      %p215 = scmp.eq.s32.totalorder %s30, 1
      %p216 = por %p214, %p215
      %p217 = scmp.ne.s32.totalorder %s206, %s207
      %p218 = scmp.eq.s32.totalorder %s30, 0
      %p219 = por %p217, %p218
      %p220 = scmp.ne.s32.totalorder %s206, %s207
      %p221 = scmp.eq.s32.totalorder %s31, 1
      %p222 = por %p220, %p221
      %p224 = scmp.ne.s32.totalorder %s207, %s223
      %p225 = scmp.eq.s32.totalorder %s31, 0
      %p226 = por %p224, %p225
      %s227 = ssub.s32 %s32, %s44
      %s228 = ssub.s32 %s33, %s40
      %s229 = sor.u32 %s227, %s228
      %p230 = scmp.eq.s32.totalorder %s229, 0
      %s232 = sadd.s32 %s231, 1
      %s233 = scalar_select %p230, %s231, %s232
      %p236 = pneg %p230
      %p237 = scmp.eq.s32.totalorder %s25, 1
      %p238 = por %p236, %p237
      %p239 = scmp.ne.s32.totalorder %s231, %s234
      %p240 = scmp.eq.s32.totalorder %s25, 0
      %p241 = por %p239, %p240
      %p242 = scmp.ne.s32.totalorder %s231, %s234
      %p243 = scmp.eq.s32.totalorder %s30, 1
      %p244 = por %p242, %p243
      %p245 = scmp.ne.s32.totalorder %s234, %s235
      %p246 = scmp.eq.s32.totalorder %s30, 0
      %p247 = por %p245, %p246
      %p248 = scmp.ne.s32.totalorder %s234, %s235
      %p249 = scmp.eq.s32.totalorder %s31, 1
      %p250 = por %p248, %p249
      %p252 = scmp.ne.s32.totalorder %s235, %s251
      %p253 = scmp.eq.s32.totalorder %s31, 0
      %p254 = por %p252, %p253
      %p255 = scmp.le.s32.totalorder 1, %s25
      %p256 = scmp.lt.s32.totalorder %s25, 3
      %p257 = pnand %p255, %p256
      %p258 = pneg %p257
      // Predicated region
      $region9: #{tpu_custom_call.1} parent=5 // pred_check
        _
      $region10: #{tpu_custom_call.1} parent=5 // pred_check_branch
        %260 = sbr.rel (%p257) target = $region12
      $region11: #{tpu_custom_call.1} parent=5 // pred_region
        %s261 = ssub.s32 %s25, 1
        // Predicated region
        $region13: #{tpu_custom_call.1} parent=11 // pred_check
          %p262 = pneg %p86
        $region14: #{tpu_custom_call.1} parent=11 // pred_check_branch
          %264 = sbr.rel (%p262) target = $region16
        $region15: #{tpu_custom_call.1} parent=11 // pred_region
          _
        $region16: #{tpu_custom_call.1} parent=11 // pred_fallthru
          _
        // Predicated region
        $region17: #{tpu_custom_call.1} parent=11 // pred_check
          %p265 = pneg %p107
        $region18: #{tpu_custom_call.1} parent=11 // pred_check_branch
          %267 = sbr.rel (%p265) target = $region20
        $region19: #{tpu_custom_call.1} parent=11 // pred_region
          _
        $region20: #{tpu_custom_call.1} parent=11 // pred_fallthru
          _
        // Predicated region
        $region21: #{tpu_custom_call.1} parent=11 // pred_check
          %p268 = pneg %p128
        $region22: #{tpu_custom_call.1} parent=11 // pred_check_branch
          %270 = sbr.rel (%p268) target = $region24
        $region23: #{tpu_custom_call.1} parent=11 // pred_region
          %s272 = ssub.s32 256, 256
          %273 = vsyncadd [#allocation6], %s272
          %s274 = sshll.u32 [#allocation5], 4
          %s275 = int_to_ptr.vmem [resolvable:$true] %s274
          %280 = dma.hbm_to_vmem [thread:$0]  %s3, 256, %s275, [#allocation6], 64, 64, 4
        $region24: #{tpu_custom_call.1} parent=11 // pred_fallthru
          _
        // Predicated region
        $region25: #{tpu_custom_call.1} parent=11 // pred_check
          %p281 = pneg %p149
        $region26: #{tpu_custom_call.1} parent=11 // pred_check_branch
          %283 = sbr.rel (%p281) target = $region28
        $region27: #{tpu_custom_call.1} parent=11 // pred_region
          %s285 = ssub.s32 16, 16
          %286 = vsyncadd [#allocation6], %s285
          %s288 = sshll.u32 [#allocation7], 4
          %s289 = int_to_ptr.vmem [resolvable:$true] %s288
          %291 = dma.hbm_to_vmem [thread:$0]  %s4, 16, %s289, [#allocation6]
        $region28: #{tpu_custom_call.1} parent=11 // pred_fallthru
          _
        // Predicated region
        $region29: #{tpu_custom_call.1} parent=11 // pred_check
          %p292 = pneg %p170
        $region30: #{tpu_custom_call.1} parent=11 // pred_check_branch
          %294 = sbr.rel (%p292) target = $region32
        $region31: #{tpu_custom_call.1} parent=11 // pred_region
          _
        $region32: #{tpu_custom_call.1} parent=11 // pred_fallthru
          _
        // Predicated region
        $region33: #{tpu_custom_call.1} parent=11 // pred_check
          %p295 = pneg %p191
        $region34: #{tpu_custom_call.1} parent=11 // pred_check_branch
          %297 = sbr.rel (%p295) target = $region36
        $region35: #{tpu_custom_call.1} parent=11 // pred_region
          _
        $region36: #{tpu_custom_call.1} parent=11 // pred_fallthru
          _
      $region12: #{tpu_custom_call.1} parent=5 // pred_fallthru
        _
      %p298 = scmp.lt.s32.totalorder %s25, 2
      // Predicated region
      $region37: #{tpu_custom_call.1} parent=5 // pred_check
        %p299 = pneg %p298
      $region38: #{tpu_custom_call.1} parent=5 // pred_check_branch
        %301 = sbr.rel (%p299) target = $region40
      $region39: #{tpu_custom_call.1} parent=5 // pred_region
        // Predicated region
        $region41: #{tpu_custom_call.1} parent=39 // pred_check
          %p302 = pneg %p59
        $region42: #{tpu_custom_call.1} parent=39 // pred_check_branch
          %304 = sbr.rel (%p302) target = $region44
        $region43: #{tpu_custom_call.1} parent=39 // pred_region
          %s305 = sand.u32 %s49, 1
          %s306 = scalar_lea.sflag [#allocation3], %s305
          %s307 = sand.u32 %s49, 1
          %s308 = smul.addr %s307, 8
          %s309 = scalar_lea.vmem [#allocation2], %s308
          %s311 = ssub.s32 128, 128
          %312 = vsyncadd %s306, %s311
          %s313 = sadd.s32 %s33, %s32
          %s314 = smul.addr %s313, 128
          %s315 = scalar_lea.hbm %s0, %s314
          %s317 = sshll.u32 %s309, 4
          %s318 = int_to_ptr.vmem [resolvable:$true] %s317
          %320 = dma.hbm_to_vmem [thread:$0]  %s315, 128, %s318, %s306
        $region44: #{tpu_custom_call.1} parent=39 // pred_fallthru
          _
      $region40: #{tpu_custom_call.1} parent=5 // pred_fallthru
        _
      %p321 = scmp.le.s32.totalorder 1, %s25
      %p322 = scmp.lt.s32.totalorder %s25, 3
      %p323 = pnand %p321, %p322
      %p324 = pneg %p323
      // Predicated region
      $region45: #{tpu_custom_call.1} parent=5 // pred_check
        _
      $region46: #{tpu_custom_call.1} parent=5 // pred_check_branch
        %326 = sbr.rel (%p323) target = $region48
      $region47: #{tpu_custom_call.1} parent=5 // pred_region
        %s327 = ssub.s32 %s25, 1
        %s328 = sand.u32 %s52, 1
        %s329 = scalar_lea.sflag [#allocation3], %s328
        %s330 = sand.u32 %s52, 1
        %s331 = smul.addr %s330, 8
        %s332 = scalar_lea.vmem [#allocation2], %s331
        // Predicated region
        $region49: #{tpu_custom_call.1} parent=47 // pred_check
          %p333 = pneg %p65
        $region50: #{tpu_custom_call.1} parent=47 // pred_check_branch
          %335 = sbr.rel (%p333) target = $region52
        $region51: #{tpu_custom_call.1} parent=47 // pred_region
          %336 = dma.done %s329, 128
        $region52: #{tpu_custom_call.1} parent=47 // pred_fallthru
          _
        // Predicated region
        $region53: #{tpu_custom_call.1} parent=47 // pred_check
          %p337 = pneg %p128
        $region54: #{tpu_custom_call.1} parent=47 // pred_check_branch
          %339 = sbr.rel (%p337) target = $region56
        $region55: #{tpu_custom_call.1} parent=47 // pred_region
          %340 = dma.done [#allocation6], 256
        $region56: #{tpu_custom_call.1} parent=47 // pred_fallthru
          _
        // Predicated region
        $region57: #{tpu_custom_call.1} parent=47 // pred_check
          %p341 = pneg %p149
        $region58: #{tpu_custom_call.1} parent=47 // pred_check_branch
          %343 = sbr.rel (%p341) target = $region60
        $region59: #{tpu_custom_call.1} parent=47 // pred_region
          %344 = dma.done [#allocation6], 16
        $region60: #{tpu_custom_call.1} parent=47 // pred_fallthru
          _
        %s345 = sand.u32 %s52, 1
        %s346 = scalar_lea.sflag [#allocation3], %s345
        %s347 = sand.u32 %s52, 1
        %s348 = smul.addr %s347, 8
        %s349 = scalar_lea.vmem [#allocation2], %s348
        %p350 = pneg %p65
        %p351 = pneg %p62
        %p352 = pneg %p86
        %p353 = pneg %p83
        %p354 = pneg %p107
        %p355 = pneg %p104
        %p356 = pneg %p128
        %p357 = pneg %p125
        %p358 = pneg %p149
        %p359 = pneg %p146
        %p360 = pneg %p170
        %p361 = pneg %p167
        %p362 = pneg %p191
        %p363 = pneg %p188
        %p364 = pneg %p219
        %p365 = pneg %p216
        %s366 = sand.u32 %s206, 1
        %s367 = scalar_lea.sflag [#allocation4], %s366
        %s368 = sand.u32 %s206, 1
        %s369 = smul.addr %s368, 8
        %s370 = scalar_lea.vmem [#allocation8], %s369
        %p371 = pneg %p247
        %p372 = pneg %p244
        %s373 = sand.u32 %s234, 1
        %s374 = scalar_lea.sflag [#allocation10], %s373
        %s375 = sand.u32 %s234, 1
        %s376 = smul.addr %s375, 8
        %s377 = scalar_lea.vmem [#allocation9], %s376
        %v379 = vld [vmem:[%s332] sm:$0xff]
        %v380 = vld [vmem:[%s1] sm:$0x1]
        %v381 = vld [vmem:[%s2] sm:$0x1]
        %vm382 = vcmask 261120
        %v383 = vsel %vm382, %v379, 0.0
        %384 = vadd.xlane.f32.xlu0 %v383
        %v385 = vpop.xlane.xlu0 %384
        %v386 = vrcp.pop 32.0
        %v387 = vmul.f32 %v385, %v386
        %v388 = vsub.f32 %v379, %v387
        %v389 = vmul.f32 %v388, %v388
        %v390 = vsel %vm382, %v389, 0.0
        %391 = vadd.xlane.f32.xlu0 %v390
        %v392 = vpop.xlane.xlu0 %391
        %v393 = vmul.f32 %v392, %v386
        %v394 = vadd.f32 %v393, 1e-06
        %v395 = vrsqrt.pop %v394
        %v396 = vmul.f32 %v388, %v395
        %v398 = vlaneseq
        %v399 = vshrl.u32 %v398, 7
        %v400 = vsub.s32 0, %v399
        %v401 = vrot.slane %v380, %v400
        %v403 = vmul.f32 %v396, %v401
        %v405 = vlaneseq
        %v406 = vshrl.u32 %v405, 7
        %v407 = vsub.s32 0, %v406
        %v408 = vrot.slane %v381, %v407
        %v410 = vadd.f32 %v403, %v408
        %v411 = vpack.c.bf16 %v410, %v410
        %v412 = vld [vmem:[#allocation5] sm:$0xf]
        %v413 = vld [vmem:[#allocation5 + $0x4] sm:$0xf]
        %v414 = vld [vmem:[#allocation5 + $0x8] sm:$0xf]
        %v415 = vld [vmem:[#allocation5 + $0xc] sm:$0xf]
        %v416 = vld [vmem:[#allocation7] sm:$0x1]
        %v418 = vlaneseq
        %v419 = vshrl.u32 %v418, 7
        %v420 = vsub.s32 0, %v419
        %v421 = vrot.slane %v416, %v420
        %v427 = vunpack.c.l.b16 %v412
        %v428 = vunpack.c.l.b16 %v413
        %v429 = vunpack.c.l.b16 %v414
        %v430 = vunpack.c.l.b16 %v415
        %v431 = vpack.c.b16 %v428, %v427
        %v432 = vpack.c.b16 %v430, %v429
        %v436 = vsel %vm382, %v411, 0
        %438 = vmatprep.subr.bf16.mxu0 0
        %439 = vmatpush1.bf16.msra.mxu0 %v431
        %440 = vmatprep.subr.bf16.mxu0 0
        %441 = vmatpush1.bf16.msra.mxu0 %v432
        %442 = vmatprep.subr.bf16.mxu0 0
        %443 = vmatpush1.bf16.msra.mxu0 0
        %444 = vmatprep.subr.bf16.mxu0 0
        %445 = vmatpush1.bf16.msra.mxu0 0
        %446 = vmatprep.subr.bf16.mxu0 0
        %447 = vmatpush1.bf16.msra.mxu0 0
        %448 = vmatprep.subr.bf16.mxu0 0
        %449 = vmatpush1.bf16.msra.mxu0 0
        %450 = vmatprep.subr.bf16.mxu0 0
        %451 = vmatpush1.bf16.msra.mxu0 0
        %452 = vmatprep.subr.bf16.mxu0 0
        %453 = vmatpush1.bf16.msra.mxu0 0
        %454 = vmatprep.subr.bf16.mxu0 0
        %455 = vmatpush1.bf16.msra.mxu0 0
        %456 = vmatprep.subr.bf16.mxu0 0
        %457 = vmatpush1.bf16.msra.mxu0 0
        %458 = vmatprep.subr.bf16.mxu0 0
        %459 = vmatpush1.bf16.msra.mxu0 0
        %460 = vmatprep.subr.bf16.mxu0 0
        %461 = vmatpush1.bf16.msra.mxu0 0
        %462 = vmatprep.subr.bf16.mxu0 0
        %463 = vmatpush1.bf16.msra.mxu0 0
        %464 = vmatprep.subr.bf16.mxu0 0
        %465 = vmatpush1.bf16.msra.mxu0 0
        %466 = vmatprep.subr.bf16.mxu0 0
        %467 = vmatpush1.bf16.msra.mxu0 0
        %468 = vmatprep.subr.bf16.mxu0 0
        %469 = vmatpush1.bf16.msra.mxu0 0
        %470 = vmatprep.mubr.bf16.mxu0 0
        %471 = vmatmul.mubr.bf16.gmra.mrb[0].mxu0 %v436
        %v472 = vpop.f32.mrb[0].mxu0
        %v473 = vadd.f32 %v421, %v472
        %v474 = vpop.f32.mrb[0].mxu0
        %v475 = vpop.f32.mrb[0].mxu0
        %v476 = vpop.f32.mrb[0].mxu0
        %477 = vdwg.mxu0
        %478 = vst.msk [vmem:[%s370] sm:$0xff] %vm382, %v473
        %v479 = vld [vmem:[%s5] sm:$0xf]
        %v480 = vld [vmem:[%s5 + $0x4] sm:$0xf]
        %v481 = vld [vmem:[%s5 + $0x8] sm:$0xf]
        %v482 = vld [vmem:[%s5 + $0xc] sm:$0xf]
        %v483 = vld [vmem:[%s6] sm:$0x1]
        %v485 = vlaneseq
        %v486 = vshrl.u32 %v485, 7
        %v487 = vsub.s32 0, %v486
        %v488 = vrot.slane %v483, %v487
        %v494 = vunpack.c.l.b16 %v479
        %v495 = vunpack.c.l.b16 %v480
        %v496 = vunpack.c.l.b16 %v481
        %v497 = vunpack.c.l.b16 %v482
        %v498 = vpack.c.b16 %v495, %v494
        %v499 = vpack.c.b16 %v497, %v496
        %502 = vmatprep.subr.bf16.mxu0 0
        %503 = vmatpush1.bf16.msra.mxu0 %v498
        %504 = vmatprep.subr.bf16.mxu0 0
        %505 = vmatpush1.bf16.msra.mxu0 %v499
        %506 = vmatprep.subr.bf16.mxu0 0
        %507 = vmatpush1.bf16.msra.mxu0 0
        %508 = vmatprep.subr.bf16.mxu0 0
        %509 = vmatpush1.bf16.msra.mxu0 0
        %510 = vmatprep.subr.bf16.mxu0 0
        %511 = vmatpush1.bf16.msra.mxu0 0
        %512 = vmatprep.subr.bf16.mxu0 0
        %513 = vmatpush1.bf16.msra.mxu0 0
        %514 = vmatprep.subr.bf16.mxu0 0
        %515 = vmatpush1.bf16.msra.mxu0 0
        %516 = vmatprep.subr.bf16.mxu0 0
        %517 = vmatpush1.bf16.msra.mxu0 0
        %518 = vmatprep.subr.bf16.mxu0 0
        %519 = vmatpush1.bf16.msra.mxu0 0
        %520 = vmatprep.subr.bf16.mxu0 0
        %521 = vmatpush1.bf16.msra.mxu0 0
        %522 = vmatprep.subr.bf16.mxu0 0
        %523 = vmatpush1.bf16.msra.mxu0 0
        %524 = vmatprep.subr.bf16.mxu0 0
        %525 = vmatpush1.bf16.msra.mxu0 0
        %526 = vmatprep.subr.bf16.mxu0 0
        %527 = vmatpush1.bf16.msra.mxu0 0
        %528 = vmatprep.subr.bf16.mxu0 0
        %529 = vmatpush1.bf16.msra.mxu0 0
        %530 = vmatprep.subr.bf16.mxu0 0
        %531 = vmatpush1.bf16.msra.mxu0 0
        %532 = vmatprep.subr.bf16.mxu0 0
        %533 = vmatpush1.bf16.msra.mxu0 0
        %534 = vmatprep.mubr.bf16.mxu0 0
        %535 = vmatmul.mubr.bf16.gmra.mrb[0].mxu0 %v436
        %v536 = vpop.f32.mrb[0].mxu0
        %v537 = vadd.f32 %v488, %v536
        %v538 = vpop.f32.mrb[0].mxu0
        %v539 = vpop.f32.mrb[0].mxu0
        %v540 = vpop.f32.mrb[0].mxu0
        %541 = vdwg.mxu0
        %542 = vst.msk [vmem:[%s377] sm:$0xff] %vm382, %v537
        %s543 = sand.u32 %s206, 1
        %s544 = scalar_lea.sflag [#allocation4], %s543
        %s545 = sand.u32 %s206, 1
        %s546 = smul.addr %s545, 8
        %s547 = scalar_lea.vmem [#allocation8], %s546
        %s548 = sand.u32 %s234, 1
        %s549 = scalar_lea.sflag [#allocation10], %s548
        %s550 = sand.u32 %s234, 1
        %s551 = smul.addr %s550, 8
        %s552 = scalar_lea.vmem [#allocation9], %s551
        // Predicated region
        $region61: #{tpu_custom_call.1} parent=47 // pred_check
          %p553 = pneg %p216
        $region62: #{tpu_custom_call.1} parent=47 // pred_check_branch
          %555 = sbr.rel (%p553) target = $region64
        $region63: #{tpu_custom_call.1} parent=47 // pred_region
          %s557 = ssub.s32 128, 128
          %558 = vsyncadd %s544, %s557
          %s559 = sadd.s32 %s35, %s34
          %s560 = smul.addr %s559, 128
          %s561 = scalar_lea.hbm %s7, %s560
          %s563 = sshll.u32 %s547, 4
          %s564 = int_to_ptr.vmem [resolvable:$true] %s563
          %566 = dma.vmem_to_hbm [thread:$0]  %s564, 128, %s561, %s544
        $region64: #{tpu_custom_call.1} parent=47 // pred_fallthru
          _
        // Predicated region
        $region65: #{tpu_custom_call.1} parent=47 // pred_check
          %p567 = pneg %p244
        $region66: #{tpu_custom_call.1} parent=47 // pred_check_branch
          %569 = sbr.rel (%p567) target = $region68
        $region67: #{tpu_custom_call.1} parent=47 // pred_region
          %s571 = ssub.s32 128, 128
          %572 = vsyncadd %s549, %s571
          %s573 = sadd.s32 %s35, %s34
          %s574 = smul.addr %s573, 128
          %s575 = scalar_lea.hbm %s8, %s574
          %s577 = sshll.u32 %s552, 4
          %s578 = int_to_ptr.vmem [resolvable:$true] %s577
          %580 = dma.vmem_to_hbm [thread:$0]  %s578, 128, %s575, %s549
        $region68: #{tpu_custom_call.1} parent=47 // pred_fallthru
          _
      $region48: #{tpu_custom_call.1} parent=5 // pred_fallthru
        _
      %p581 = scmp.le.s32.totalorder 2, %s25
      // Predicated region
      $region69: #{tpu_custom_call.1} parent=5 // pred_check
        %p582 = pneg %p581
      $region70: #{tpu_custom_call.1} parent=5 // pred_check_branch
        %584 = sbr.rel (%p582) target = $region72
      $region71: #{tpu_custom_call.1} parent=5 // pred_region
        %s585 = ssub.s32 %s25, 2
        // Predicated region
        $region73: #{tpu_custom_call.1} parent=71 // pred_check
          %p586 = pneg %p222
        $region74: #{tpu_custom_call.1} parent=71 // pred_check_branch
          %588 = sbr.rel (%p586) target = $region76
        $region75: #{tpu_custom_call.1} parent=71 // pred_region
          %s589 = sand.u32 %s207, 1
          %s590 = scalar_lea.sflag [#allocation4], %s589
          %s591 = sand.u32 %s207, 1
          %s592 = smul.addr %s591, 8
          %s593 = scalar_lea.vmem [#allocation8], %s592
          %594 = dma.done %s590, 128
        $region76: #{tpu_custom_call.1} parent=71 // pred_fallthru
          _
        // Predicated region
        $region77: #{tpu_custom_call.1} parent=71 // pred_check
          %p595 = pneg %p250
        $region78: #{tpu_custom_call.1} parent=71 // pred_check_branch
          %597 = sbr.rel (%p595) target = $region80
        $region79: #{tpu_custom_call.1} parent=71 // pred_region
          %s598 = sand.u32 %s235, 1
          %s599 = scalar_lea.sflag [#allocation10], %s598
          %s600 = sand.u32 %s235, 1
          %s601 = smul.addr %s600, 8
          %s602 = scalar_lea.vmem [#allocation9], %s601
          %603 = dma.done %s599, 128
        $region80: #{tpu_custom_call.1} parent=71 // pred_fallthru
          _
      $region72: #{tpu_custom_call.1} parent=5 // pred_fallthru
        _
    $region6: #{tpu_custom_call.1} parent=1 // loop_footer
      %s29 = sadd.s32 1, %s25
    $region7: #{tpu_custom_call.1} parent=1 // loop_footer_branch
      %24 = sbr.rel target = $region3
    $region8: #{tpu_custom_call.1} parent=1 // loop_exit
      _
    %604 = vsyncpa [#allocation3], 1
    %s605 = scalar_lea.sflag [#allocation3], 1
    %606 = vsyncpa %s605, 1
    %607 = vsyncpa [#allocation6], 1
    %608 = vsyncpa [#allocation4], 1
    %s609 = scalar_lea.sflag [#allocation4], 1
    %610 = vsyncpa %s609, 1
    %611 = vsyncpa [#allocation10], 1
    %s612 = scalar_lea.sflag [#allocation10], 1
    %613 = vsyncpa %s612, 1

</llo_original>
